<compile_context>
chip_gen: v5e
topology: v5e:2x2
jax: 0.10.0
libtpu: 0.0.40
codegen_flags: <defaults>
</compile_context>

<pallas_src>
import functools
import math

import jax
import jax.numpy as jnp
from jax.experimental import pallas as pl
from jax.experimental.pallas import tpu as pltpu


def encoder_layer_kernel(x_ref, mcol_ref, mrow_ref, ekt_ref, ev_ref,
                         wqkv_ref, bqkv_ref, wo_ref, bo_ref,
                         g1_ref, be1_ref, w1_ref, bf1_ref, w2_ref, bf2_ref,
                         g2_ref, be2_ref, o_ref, *, n_heads, window, eps):
    """One Encoder layer (rel-pos MHA + LN + FFN + LN) for one batch item."""
    x = x_ref[0]              # (T, C)  f32
    mcol = mcol_ref[0]        # (T, 1)  sequence mask (query side)
    mrow = mrow_ref[0]        # (1, T)  sequence mask (key side)
    T, C = x.shape
    H = n_heads
    Dk = C // H
    nrel = 2 * window + 1
    scale = 1.0 / math.sqrt(Dk)

    # ---- fused QKV projection: one wide MXU matmul --------------------------
    xb = x.astype(jnp.bfloat16)
    qkv = jnp.dot(xb, wqkv_ref[...],
                  preferred_element_type=jnp.float32) + bqkv_ref[...]   # (T, 3C)

    # ---- shared index / mask material (built once, int32 + bool only) -------
    row = jax.lax.broadcasted_iota(jnp.int32, (T, T), 0)
    col = jax.lax.broadcasted_iota(jnp.int32, (T, T), 1)
    diff = col - row                                                    # s - t
    amask = (mcol * mrow) > 0.0                                         # (T, T)

    ekt = ekt_ref[...]        # (Dk, 2W+1) bf16
    ev = ev_ref[...]          # (2W+1, Dk) f32

    # ---- per-head attention (plain 2D ops; H is small) ----------------------
    y = jnp.zeros((T, C), jnp.float32)
    for h in range(H):
        qh = qkv[:, h * Dk:(h + 1) * Dk].astype(jnp.bfloat16)           # (T, Dk)
        kh = qkv[:, C + h * Dk:C + (h + 1) * Dk].astype(jnp.bfloat16)
        vh = qkv[:, 2 * C + h * Dk:2 * C + (h + 1) * Dk].astype(jnp.bfloat16)

        # content logits (MXU)
        s = jnp.einsum('td,sd->ts', qh, kh,
                       preferred_element_type=jnp.float32) * scale      # (T, T)

        # relative-key logits: tiny matmul q @ E_rel_k^T -> (T, 2W+1) band
        qe = jnp.dot(qh, ekt, preferred_element_type=jnp.float32) * scale

        # scatter the band onto the +/-window diagonals; one (T,T) compare
        # per offset, no precomputed f32 masks kept live.
        for j in range(nrel):
            s = s + jnp.where(diff == (j - window), qe[:, j:j + 1], 0.0)

        # sequence mask + softmax (f32 stats, EUP reciprocal)
        s = jnp.where(amask, s, -1e4)
        s = s - jnp.max(s, axis=-1, keepdims=True)
        p = jnp.exp(s)
        p = p * pl.reciprocal(jnp.sum(p, axis=-1, keepdims=True), approx=True)

        # P @ V (MXU)
        out_h = jnp.dot(p.astype(jnp.bfloat16), vh,
                        preferred_element_type=jnp.float32)             # (T, Dk)

        # relative-value term: band column (masked row-sum) x E_v row outer
        # products, accumulated directly (no concat, no extra matmul).
        for j in range(nrel):
            colsum = jnp.sum(jnp.where(diff == (j - window), p, 0.0),
                             axis=-1, keepdims=True)                    # (T, 1)
            out_h = out_h + colsum * ev[j:j + 1, :]

        # output projection: accumulate per-head (T,Dk)@(Dk,C) into (T,C)
        y = y + jnp.dot(out_h.astype(jnp.bfloat16), wo_ref[h],
                        preferred_element_type=jnp.float32)

    y = y + bo_ref[...]

    # ---- residual + LayerNorm 1 (over channels, f32) -------------------------
    z = x + y
    mu = jnp.mean(z, axis=-1, keepdims=True)
    var = jnp.mean((z - mu) ** 2, axis=-1, keepdims=True)
    z = (z - mu) * jax.lax.rsqrt(var + eps) * g1_ref[...] + be1_ref[...]

    # ---- FFN (kernel_size=1 -> pointwise): conv1(x*m) -> relu -> conv2(x*m) -> *m
    f = jnp.dot((z * mcol).astype(jnp.bfloat16), w1_ref[...],
                preferred_element_type=jnp.float32) + bf1_ref[...]
    f = jnp.maximum(f, 0.0)
    f2 = jnp.dot((f * mcol).astype(jnp.bfloat16), w2_ref[...],
                 preferred_element_type=jnp.float32) + bf2_ref[...]
    y2 = f2 * mcol

    # ---- residual + LayerNorm 2 ----------------------------------------------
    w = z + y2
    mu2 = jnp.mean(w, axis=-1, keepdims=True)
    var2 = jnp.mean((w - mu2) ** 2, axis=-1, keepdims=True)
    w = (w - mu2) * jax.lax.rsqrt(var2 + eps) * g2_ref[...] + be2_ref[...]

    o_ref[0] = w.astype(o_ref.dtype)


def _vmem_limit_bytes(T, C, F_, H):
    """Rough per-grid-step VMEM estimate, clamped for v7x headroom."""
    scores = 5 * T * T * 4                                  # live (T,T) f32 temps
    acts = T * (8 * C + 2 * F_) * 4                         # x/qkv/ffn activations
    weights = 2 * 2 * (3 * C * C + C * C + C * F_ + F_ * C) # bf16, double-buffered
    est = scores + acts + weights + (2 << 20)
    return int(min(56 * 2 ** 20, max(32 * 2 ** 20, est)))


def run_layer(x, mcol, mrow, lp, n_heads, window):
    B, T, C = x.shape
    H = n_heads
    Dk = C // H
    F_ = lp["w1"].shape[1]
    nrel = 2 * window + 1

    # Fused QKV weight / bias (wrapper-side, zero in-kernel relayouts).
    wqkv = jnp.concatenate([lp["wq"], lp["wk"], lp["wv"]], axis=1).astype(jnp.bfloat16)
    bqkv = jnp.concatenate([lp["bq"], lp["bk"], lp["bv"]], axis=1)       # (1, 3C) f32
    wo_h = lp["wo"].reshape(H, Dk, C).astype(jnp.bfloat16)               # per-head rows
    w1_b = lp["w1"].astype(jnp.bfloat16)
    w2_b = lp["w2"].astype(jnp.bfloat16)

    # Shared relative tables (heads_share=True): one copy each, no H broadcast.
    ekt = jnp.transpose(lp["emb_rel_k"]).astype(jnp.bfloat16)            # (Dk, 2W+1)
    ev = lp["emb_rel_v"].astype(jnp.float32)                             # (2W+1, Dk)

    kern = functools.partial(encoder_layer_kernel, n_heads=H, window=window,
                             eps=1e-5)

    per_b = lambda b: (b, 0, 0)
    bc3 = lambda b: (0, 0, 0)
    bc2 = lambda b: (0, 0)

    in_specs = [
        pl.BlockSpec((1, T, C), per_b),                                  # x
        pl.BlockSpec((1, T, 1), per_b),                                  # mask (col)
        pl.BlockSpec((1, 1, T), per_b),                                  # mask (row)
        pl.BlockSpec((Dk, nrel), bc2),                                   # E_rel_k^T
        pl.BlockSpec((nrel, Dk), bc2),                                   # E_rel_v
        pl.BlockSpec((C, 3 * C), bc2), pl.BlockSpec((1, 3 * C), bc2),    # wqkv, bqkv
        pl.BlockSpec((H, Dk, C), bc3), pl.BlockSpec((1, C), bc2),        # wo, bo
        pl.BlockSpec((1, C), bc2), pl.BlockSpec((1, C), bc2),            # g1, be1
        pl.BlockSpec((C, F_), bc2), pl.BlockSpec((1, F_), bc2),          # w1, b1
        pl.BlockSpec((F_, C), bc2), pl.BlockSpec((1, C), bc2),           # w2, b2
        pl.BlockSpec((1, C), bc2), pl.BlockSpec((1, C), bc2),            # g2, be2
    ]
    out_spec = pl.BlockSpec((1, T, C), per_b)

    return pl.pallas_call(
        kern,
        out_shape=jax.ShapeDtypeStruct((B, T, C), jnp.float32),
        grid_spec=pltpu.PrefetchScalarGridSpec(
            num_scalar_prefetch=0,
            grid=(B,),
            in_specs=in_specs,
            out_specs=out_spec,
        ),
        compiler_params=pltpu.CompilerParams(
            dimension_semantics=("parallel",),
            vmem_limit_bytes=_vmem_limit_bytes(T, C, F_, H),
        ),
    )(x, mcol, mrow, ekt, ev, wqkv, bqkv,
      wo_h, lp["bo"], lp["g1"], lp["be1"],
      w1_b, lp["bf1"], w2_b, lp["bf2"], lp["g2"], lp["be2"])


def init_params(key, hidden, filt, n_heads, n_layers, window):
    Dk = hidden // n_heads
    rel_std = Dk ** -0.5
    layers = []
    for i in range(n_layers):
        ks = jax.random.split(jax.random.fold_in(key, i), 16)
        s = 0.1
        lp = dict(
            wq=jax.random.normal(ks[0], (hidden, hidden), jnp.float32) * s,
            bq=jax.random.normal(ks[1], (1, hidden), jnp.float32) * 0.01,
            wk=jax.random.normal(ks[2], (hidden, hidden), jnp.float32) * s,
            bk=jax.random.normal(ks[3], (1, hidden), jnp.float32) * 0.01,
            wv=jax.random.normal(ks[4], (hidden, hidden), jnp.float32) * s,
            bv=jax.random.normal(ks[5], (1, hidden), jnp.float32) * 0.01,
            wo=jax.random.normal(ks[6], (hidden, hidden), jnp.float32) * s,
            bo=jax.random.normal(ks[7], (1, hidden), jnp.float32) * 0.01,
            g1=jnp.ones((1, hidden), jnp.float32),
            be1=jnp.zeros((1, hidden), jnp.float32),
            w1=jax.random.normal(ks[8], (hidden, filt), jnp.float32) * s,
            bf1=jax.random.normal(ks[9], (1, filt), jnp.float32) * 0.01,
            w2=jax.random.normal(ks[10], (filt, hidden), jnp.float32) * s,
            bf2=jax.random.normal(ks[11], (1, hidden), jnp.float32) * 0.01,
            g2=jnp.ones((1, hidden), jnp.float32),
            be2=jnp.zeros((1, hidden), jnp.float32),
            emb_rel_k=jax.random.normal(ks[12], (2 * window + 1, Dk), jnp.float32) * rel_std,
            emb_rel_v=jax.random.normal(ks[13], (2 * window + 1, Dk), jnp.float32) * rel_std,
        )
        layers.append(lp)
    return layers


def encoder_forward(x_bct, x_mask_b1t, layers, *, n_heads, window_size):
    """x_bct: [B, C, T] (PyTorch layout), x_mask_b1t: [B, 1, T]. Returns [B, C, T]."""
    B, C, T = x_bct.shape
    assert C % n_heads == 0
    x = jnp.transpose(x_bct, (0, 2, 1)).astype(jnp.float32)   # (B, T, C)
    mrow = x_mask_b1t.astype(jnp.float32)                      # (B, 1, T)
    mcol = jnp.transpose(mrow, (0, 2, 1))                      # (B, T, 1)

    x = x * mcol
    for lp in layers:
        x = run_layer(x, mcol, mrow, lp, n_heads, window_size)
    x = x * mcol
    return jnp.transpose(x, (0, 2, 1))                         # back to [B, C, T]


if __name__ == "__main__":
    B, T = 2, 8
    hidden, filt = 32, 64
    n_heads, n_layers, window = 2, 2, 4

    key = jax.random.PRNGKey(0)
    kx, kp = jax.random.split(key)

    x = jax.random.normal(kx, (B, hidden, T), jnp.float32)     # PyTorch NCT layout
    lengths = jnp.array([8, 5])
    x_mask = (jnp.arange(T)[None, :] < lengths[:, None]).astype(jnp.float32)[:, None, :]

    layers = init_params(kp, hidden, filt, n_heads, n_layers, window)

    out = encoder_forward(x, x_mask, layers, n_heads=n_heads, window_size=window)
    out = jax.block_until_ready(out)
    assert out.shape == (B, hidden, T)
    assert jnp.all(jnp.isfinite(out))
    print("KERNEL_OK")
</pallas_src>

<mosaic_0001>
module attributes {stable_mosaic.version = 11 : i64} {
  func.func @encoder_layer_kernel(%arg0: i32, %arg1: memref<1x8x32xf32, #tpu.memory_space<vmem>>, %arg2: memref<1x8x1xf32, #tpu.memory_space<vmem>>, %arg3: memref<1x1x8xf32, #tpu.memory_space<vmem>>, %arg4: memref<16x9xbf16, #tpu.memory_space<vmem>>, %arg5: memref<9x16xf32, #tpu.memory_space<vmem>>, %arg6: memref<32x96xbf16, #tpu.memory_space<vmem>>, %arg7: memref<1x96xf32, #tpu.memory_space<vmem>>, %arg8: memref<2x16x32xbf16, #tpu.memory_space<vmem>>, %arg9: memref<1x32xf32, #tpu.memory_space<vmem>>, %arg10: memref<1x32xf32, #tpu.memory_space<vmem>>, %arg11: memref<1x32xf32, #tpu.memory_space<vmem>>, %arg12: memref<32x64xbf16, #tpu.memory_space<vmem>>, %arg13: memref<1x64xf32, #tpu.memory_space<vmem>>, %arg14: memref<64x32xbf16, #tpu.memory_space<vmem>>, %arg15: memref<1x32xf32, #tpu.memory_space<vmem>>, %arg16: memref<1x32xf32, #tpu.memory_space<vmem>>, %arg17: memref<1x32xf32, #tpu.memory_space<vmem>>, %arg18: memref<1x8x32xf32, #tpu.memory_space<vmem>>) attributes {dimension_semantics = [#tpu.dimension_semantics<parallel>], iteration_bounds = array<i64: 2>, scalar_prefetch = 0 : i64, scratch_operands = 0 : i64, tpu.core_type = #tpu.core_type<tc>, window_params = [{transform_indices = @transform_0, window_bounds = array<i64: 1, 8, 32>}, {transform_indices = @transform_1, window_bounds = array<i64: 1, 8, 1>}, {transform_indices = @transform_2, window_bounds = array<i64: 1, 1, 8>}, {pipeline_mode = #tpu.pipeline_mode<synchronous>, transform_indices = @transform_3, window_bounds = array<i64: 16, 9>}, {pipeline_mode = #tpu.pipeline_mode<synchronous>, transform_indices = @transform_4, window_bounds = array<i64: 9, 16>}, {pipeline_mode = #tpu.pipeline_mode<synchronous>, transform_indices = @transform_5, window_bounds = array<i64: 32, 96>}, {pipeline_mode = #tpu.pipeline_mode<synchronous>, transform_indices = @transform_6, window_bounds = array<i64: 1, 96>}, {pipeline_mode = #tpu.pipeline_mode<synchronous>, transform_indices = @transform_7, window_bounds = array<i64: 2, 16, 32>}, {pipeline_mode = #tpu.pipeline_mode<synchronous>, transform_indices = @transform_8, window_bounds = array<i64: 1, 32>}, {pipeline_mode = #tpu.pipeline_mode<synchronous>, transform_indices = @transform_9, window_bounds = array<i64: 1, 32>}, {pipeline_mode = #tpu.pipeline_mode<synchronous>, transform_indices = @transform_10, window_bounds = array<i64: 1, 32>}, {pipeline_mode = #tpu.pipeline_mode<synchronous>, transform_indices = @transform_11, window_bounds = array<i64: 32, 64>}, {pipeline_mode = #tpu.pipeline_mode<synchronous>, transform_indices = @transform_12, window_bounds = array<i64: 1, 64>}, {pipeline_mode = #tpu.pipeline_mode<synchronous>, transform_indices = @transform_13, window_bounds = array<i64: 64, 32>}, {pipeline_mode = #tpu.pipeline_mode<synchronous>, transform_indices = @transform_14, window_bounds = array<i64: 1, 32>}, {pipeline_mode = #tpu.pipeline_mode<synchronous>, transform_indices = @transform_15, window_bounds = array<i64: 1, 32>}, {pipeline_mode = #tpu.pipeline_mode<synchronous>, transform_indices = @transform_16, window_bounds = array<i64: 1, 32>}, {transform_indices = @transform_17, window_bounds = array<i64: 1, 8, 32>}]} {
    %c0 = arith.constant 0 : index
    %c0_0 = arith.constant 0 : index
    %c0_1 = arith.constant 0 : index
    %0 = vector.load %arg1[%c0, %c0_0, %c0_1] : memref<1x8x32xf32, #tpu.memory_space<vmem>>, vector<1x8x32xf32>
    %1 = vector.shape_cast %0 : vector<1x8x32xf32> to vector<8x32xf32>
    %c0_2 = arith.constant 0 : index
    %c0_3 = arith.constant 0 : index
    %c0_4 = arith.constant 0 : index
    %2 = vector.load %arg2[%c0_2, %c0_3, %c0_4] : memref<1x8x1xf32, #tpu.memory_space<vmem>>, vector<1x8x1xf32>
    %3 = vector.shape_cast %2 : vector<1x8x1xf32> to vector<8x1xf32>
    %c0_5 = arith.constant 0 : index
    %c0_6 = arith.constant 0 : index
    %c0_7 = arith.constant 0 : index
    %4 = vector.load %arg3[%c0_5, %c0_6, %c0_7] : memref<1x1x8xf32, #tpu.memory_space<vmem>>, vector<1x1x8xf32>
    %5 = vector.shape_cast %4 : vector<1x1x8xf32> to vector<1x8xf32>
    %6 = arith.truncf %1 : vector<8x32xf32> to vector<8x32xbf16>
    %c0_8 = arith.constant 0 : index
    %c0_9 = arith.constant 0 : index
    %7 = vector.load %arg6[%c0_8, %c0_9] : memref<32x96xbf16, #tpu.memory_space<vmem>>, vector<32x96xbf16>
    %cst = arith.constant dense<0.000000e+00> : vector<8x96xf32>
    %8 = tpu.matmul %6, %7, %cst {dimension_numbers = #tpu.dot_dimension_numbers<[1], [0], [0], [1], [0, 0, 1, 1], [], []>} : vector<8x32xbf16>, vector<32x96xbf16>, vector<8x96xf32> -> vector<8x96xf32>
    %c0_10 = arith.constant 0 : index
    %c0_11 = arith.constant 0 : index
    %9 = vector.load %arg7[%c0_10, %c0_11] : memref<1x96xf32, #tpu.memory_space<vmem>>, vector<1x96xf32>
    %10 = vector.broadcast %9 : vector<1x96xf32> to vector<8x96xf32>
    %11 = arith.addf %8, %10 : vector<8x96xf32>
    %12 = tpu.iota {dimensions = array<i32: 0>} : vector<8x8xi32>
    %13 = tpu.iota {dimensions = array<i32: 1>} : vector<8x8xi32>
    %14 = arith.subi %13, %12 : vector<8x8xi32>
    %15 = vector.broadcast %3 : vector<8x1xf32> to vector<8x8xf32>
    %16 = vector.broadcast %5 : vector<1x8xf32> to vector<8x8xf32>
    %17 = arith.mulf %15, %16 : vector<8x8xf32>
    %cst_12 = arith.constant 0.000000e+00 : f32
    %18 = vector.broadcast %cst_12 : f32 to vector<8x8xf32>
    %19 = arith.cmpf ogt, %17, %18 : vector<8x8xf32>
    %c0_13 = arith.constant 0 : index
    %c0_14 = arith.constant 0 : index
    %20 = vector.load %arg4[%c0_13, %c0_14] : memref<16x9xbf16, #tpu.memory_space<vmem>>, vector<16x9xbf16>
    %c0_15 = arith.constant 0 : index
    %c0_16 = arith.constant 0 : index
    %21 = vector.load %arg5[%c0_15, %c0_16] : memref<9x16xf32, #tpu.memory_space<vmem>>, vector<9x16xf32>
    %cst_17 = arith.constant 0.000000e+00 : f32
    %22 = vector.broadcast %cst_17 : f32 to vector<8x32xf32>
    %23 = vector.extract_strided_slice %11 {offsets = [0, 0], sizes = [8, 16], strides = [1, 1]} : vector<8x96xf32> to vector<8x16xf32>
    %24 = arith.truncf %23 : vector<8x16xf32> to vector<8x16xbf16>
    %25 = vector.extract_strided_slice %11 {offsets = [0, 32], sizes = [8, 16], strides = [1, 1]} : vector<8x96xf32> to vector<8x16xf32>
    %26 = arith.truncf %25 : vector<8x16xf32> to vector<8x16xbf16>
    %27 = vector.extract_strided_slice %11 {offsets = [0, 64], sizes = [8, 16], strides = [1, 1]} : vector<8x96xf32> to vector<8x16xf32>
    %28 = arith.truncf %27 : vector<8x16xf32> to vector<8x16xbf16>
    "tpu.trace_start"() <{level = 10 : i32, message = "td,sd->ts"}> : () -> ()
    %cst_18 = arith.constant dense<0.000000e+00> : vector<8x8xf32>
    %29 = tpu.matmul %24, %26, %cst_18 {dimension_numbers = #tpu.dot_dimension_numbers<[1], [1], [0], [0], [0, 0, 1, 0], [], []>} : vector<8x16xbf16>, vector<8x16xbf16>, vector<8x8xf32> -> vector<8x8xf32>
    "tpu.trace_stop"() : () -> ()
    %cst_19 = arith.constant 2.500000e-01 : f32
    %30 = vector.broadcast %cst_19 : f32 to vector<8x8xf32>
    %31 = arith.mulf %29, %30 : vector<8x8xf32>
    %cst_20 = arith.constant dense<0.000000e+00> : vector<8x9xf32>
    %32 = tpu.matmul %24, %20, %cst_20 {dimension_numbers = #tpu.dot_dimension_numbers<[1], [0], [0], [1], [0, 0, 1, 1], [], []>} : vector<8x16xbf16>, vector<16x9xbf16>, vector<8x9xf32> -> vector<8x9xf32>
    %cst_21 = arith.constant 2.500000e-01 : f32
    %33 = vector.broadcast %cst_21 : f32 to vector<8x9xf32>
    %34 = arith.mulf %32, %33 : vector<8x9xf32>
    %c-4_i32 = arith.constant -4 : i32
    %35 = vector.broadcast %c-4_i32 : i32 to vector<8x8xi32>
    %36 = arith.cmpi eq, %14, %35 : vector<8x8xi32>
    %37 = vector.extract_strided_slice %34 {offsets = [0, 0], sizes = [8, 1], strides = [1, 1]} : vector<8x9xf32> to vector<8x1xf32>
    %cst_22 = arith.constant 0.000000e+00 : f32
    %38 = vector.shape_cast %37 : vector<8x1xf32> to vector<8x1xf32>
    %39 = vector.broadcast %38 : vector<8x1xf32> to vector<8x8xf32>
    %40 = vector.broadcast %cst_22 : f32 to vector<8x8xf32>
    %41 = arith.select %36, %39, %40 : vector<8x8xi1>, vector<8x8xf32>
    %42 = arith.addf %31, %41 : vector<8x8xf32>
    %c-3_i32 = arith.constant -3 : i32
    %43 = vector.broadcast %c-3_i32 : i32 to vector<8x8xi32>
    %44 = arith.cmpi eq, %14, %43 : vector<8x8xi32>
    %45 = vector.extract_strided_slice %34 {offsets = [0, 1], sizes = [8, 1], strides = [1, 1]} : vector<8x9xf32> to vector<8x1xf32>
    %cst_23 = arith.constant 0.000000e+00 : f32
    %46 = vector.shape_cast %45 : vector<8x1xf32> to vector<8x1xf32>
    %47 = vector.broadcast %46 : vector<8x1xf32> to vector<8x8xf32>
    %48 = vector.broadcast %cst_23 : f32 to vector<8x8xf32>
    %49 = arith.select %44, %47, %48 : vector<8x8xi1>, vector<8x8xf32>
    %50 = arith.addf %42, %49 : vector<8x8xf32>
    %c-2_i32 = arith.constant -2 : i32
    %51 = vector.broadcast %c-2_i32 : i32 to vector<8x8xi32>
    %52 = arith.cmpi eq, %14, %51 : vector<8x8xi32>
    %53 = vector.extract_strided_slice %34 {offsets = [0, 2], sizes = [8, 1], strides = [1, 1]} : vector<8x9xf32> to vector<8x1xf32>
    %cst_24 = arith.constant 0.000000e+00 : f32
    %54 = vector.shape_cast %53 : vector<8x1xf32> to vector<8x1xf32>
    %55 = vector.broadcast %54 : vector<8x1xf32> to vector<8x8xf32>
    %56 = vector.broadcast %cst_24 : f32 to vector<8x8xf32>
    %57 = arith.select %52, %55, %56 : vector<8x8xi1>, vector<8x8xf32>
    %58 = arith.addf %50, %57 : vector<8x8xf32>
    %c-1_i32 = arith.constant -1 : i32
    %59 = vector.broadcast %c-1_i32 : i32 to vector<8x8xi32>
    %60 = arith.cmpi eq, %14, %59 : vector<8x8xi32>
    %61 = vector.extract_strided_slice %34 {offsets = [0, 3], sizes = [8, 1], strides = [1, 1]} : vector<8x9xf32> to vector<8x1xf32>
    %cst_25 = arith.constant 0.000000e+00 : f32
    %62 = vector.shape_cast %61 : vector<8x1xf32> to vector<8x1xf32>
    %63 = vector.broadcast %62 : vector<8x1xf32> to vector<8x8xf32>
    %64 = vector.broadcast %cst_25 : f32 to vector<8x8xf32>
    %65 = arith.select %60, %63, %64 : vector<8x8xi1>, vector<8x8xf32>
    %66 = arith.addf %58, %65 : vector<8x8xf32>
    %c0_i32 = arith.constant 0 : i32
    %67 = vector.broadcast %c0_i32 : i32 to vector<8x8xi32>
    %68 = arith.cmpi eq, %14, %67 : vector<8x8xi32>
    %69 = vector.extract_strided_slice %34 {offsets = [0, 4], sizes = [8, 1], strides = [1, 1]} : vector<8x9xf32> to vector<8x1xf32>
    %cst_26 = arith.constant 0.000000e+00 : f32
    %70 = vector.shape_cast %69 : vector<8x1xf32> to vector<8x1xf32>
    %71 = vector.broadcast %70 : vector<8x1xf32> to vector<8x8xf32>
    %72 = vector.broadcast %cst_26 : f32 to vector<8x8xf32>
    %73 = arith.select %68, %71, %72 : vector<8x8xi1>, vector<8x8xf32>
    %74 = arith.addf %66, %73 : vector<8x8xf32>
    %c1_i32 = arith.constant 1 : i32
    %75 = vector.broadcast %c1_i32 : i32 to vector<8x8xi32>
    %76 = arith.cmpi eq, %14, %75 : vector<8x8xi32>
    %77 = vector.extract_strided_slice %34 {offsets = [0, 5], sizes = [8, 1], strides = [1, 1]} : vector<8x9xf32> to vector<8x1xf32>
    %cst_27 = arith.constant 0.000000e+00 : f32
    %78 = vector.shape_cast %77 : vector<8x1xf32> to vector<8x1xf32>
    %79 = vector.broadcast %78 : vector<8x1xf32> to vector<8x8xf32>
    %80 = vector.broadcast %cst_27 : f32 to vector<8x8xf32>
    %81 = arith.select %76, %79, %80 : vector<8x8xi1>, vector<8x8xf32>
    %82 = arith.addf %74, %81 : vector<8x8xf32>
    %c2_i32 = arith.constant 2 : i32
    %83 = vector.broadcast %c2_i32 : i32 to vector<8x8xi32>
    %84 = arith.cmpi eq, %14, %83 : vector<8x8xi32>
    %85 = vector.extract_strided_slice %34 {offsets = [0, 6], sizes = [8, 1], strides = [1, 1]} : vector<8x9xf32> to vector<8x1xf32>
    %cst_28 = arith.constant 0.000000e+00 : f32
    %86 = vector.shape_cast %85 : vector<8x1xf32> to vector<8x1xf32>
    %87 = vector.broadcast %86 : vector<8x1xf32> to vector<8x8xf32>
    %88 = vector.broadcast %cst_28 : f32 to vector<8x8xf32>
    %89 = arith.select %84, %87, %88 : vector<8x8xi1>, vector<8x8xf32>
    %90 = arith.addf %82, %89 : vector<8x8xf32>
    %c3_i32 = arith.constant 3 : i32
    %91 = vector.broadcast %c3_i32 : i32 to vector<8x8xi32>
    %92 = arith.cmpi eq, %14, %91 : vector<8x8xi32>
    %93 = vector.extract_strided_slice %34 {offsets = [0, 7], sizes = [8, 1], strides = [1, 1]} : vector<8x9xf32> to vector<8x1xf32>
    %cst_29 = arith.constant 0.000000e+00 : f32
    %94 = vector.shape_cast %93 : vector<8x1xf32> to vector<8x1xf32>
    %95 = vector.broadcast %94 : vector<8x1xf32> to vector<8x8xf32>
    %96 = vector.broadcast %cst_29 : f32 to vector<8x8xf32>
    %97 = arith.select %92, %95, %96 : vector<8x8xi1>, vector<8x8xf32>
    %98 = arith.addf %90, %97 : vector<8x8xf32>
    %c4_i32 = arith.constant 4 : i32
    %99 = vector.broadcast %c4_i32 : i32 to vector<8x8xi32>
    %100 = arith.cmpi eq, %14, %99 : vector<8x8xi32>
    %101 = vector.extract_strided_slice %34 {offsets = [0, 8], sizes = [8, 1], strides = [1, 1]} : vector<8x9xf32> to vector<8x1xf32>
    %cst_30 = arith.constant 0.000000e+00 : f32
    %102 = vector.shape_cast %101 : vector<8x1xf32> to vector<8x1xf32>
    %103 = vector.broadcast %102 : vector<8x1xf32> to vector<8x8xf32>
    %104 = vector.broadcast %cst_30 : f32 to vector<8x8xf32>
    %105 = arith.select %100, %103, %104 : vector<8x8xi1>, vector<8x8xf32>
    %106 = arith.addf %98, %105 : vector<8x8xf32>
    %cst_31 = arith.constant -1.000000e+04 : f32
    %107 = vector.broadcast %cst_31 : f32 to vector<8x8xf32>
    %108 = arith.select %19, %106, %107 : vector<8x8xi1>, vector<8x8xf32>
    %cst_32 = arith.constant dense<0xFF800000> : vector<8xf32>
    %109 = vector.multi_reduction <maximumf>, %108, %cst_32 [1] : vector<8x8xf32> to vector<8xf32>
    %110 = vector.shape_cast %109 : vector<8xf32> to vector<8x1xf32>
    %111 = vector.broadcast %110 : vector<8x1xf32> to vector<8x8xf32>
    %112 = arith.subf %108, %111 : vector<8x8xf32>
    %113 = math.exp %112 : vector<8x8xf32>
    %cst_33 = arith.constant dense<0.000000e+00> : vector<8xf32>
    %114 = vector.multi_reduction <add>, %113, %cst_33 [1] : vector<8x8xf32> to vector<8xf32>
    %115 = vector.shape_cast %114 : vector<8xf32> to vector<8x1xf32>
    %116 = tpu.reciprocal %115 {approx = true} : vector<8x1xf32> -> vector<8x1xf32>
    %117 = vector.broadcast %116 : vector<8x1xf32> to vector<8x8xf32>
    %118 = arith.mulf %113, %117 : vector<8x8xf32>
    %119 = arith.truncf %118 : vector<8x8xf32> to vector<8x8xbf16>
    %cst_34 = arith.constant dense<0.000000e+00> : vector<8x16xf32>
    %120 = tpu.matmul %119, %28, %cst_34 {dimension_numbers = #tpu.dot_dimension_numbers<[1], [0], [0], [1], [0, 0, 1, 1], [], []>} : vector<8x8xbf16>, vector<8x16xbf16>, vector<8x16xf32> -> vector<8x16xf32>
    %c-4_i32_35 = arith.constant -4 : i32
    %121 = vector.broadcast %c-4_i32_35 : i32 to vector<8x8xi32>
    %122 = arith.cmpi eq, %14, %121 : vector<8x8xi32>
    %cst_36 = arith.constant 0.000000e+00 : f32
    %123 = vector.broadcast %cst_36 : f32 to vector<8x8xf32>
    %124 = arith.select %122, %118, %123 : vector<8x8xi1>, vector<8x8xf32>
    %cst_37 = arith.constant dense<0.000000e+00> : vector<8xf32>
    %125 = vector.multi_reduction <add>, %124, %cst_37 [1] : vector<8x8xf32> to vector<8xf32>
    %126 = vector.shape_cast %125 : vector<8xf32> to vector<8x1xf32>
    %127 = vector.extract_strided_slice %21 {offsets = [0, 0], sizes = [1, 16], strides = [1, 1]} : vector<9x16xf32> to vector<1x16xf32>
    %128 = vector.broadcast %126 : vector<8x1xf32> to vector<8x16xf32>
    %129 = vector.broadcast %127 : vector<1x16xf32> to vector<8x16xf32>
    %130 = arith.mulf %128, %129 : vector<8x16xf32>
    %131 = arith.addf %120, %130 : vector<8x16xf32>
    %c-3_i32_38 = arith.constant -3 : i32
    %132 = vector.broadcast %c-3_i32_38 : i32 to vector<8x8xi32>
    %133 = arith.cmpi eq, %14, %132 : vector<8x8xi32>
    %cst_39 = arith.constant 0.000000e+00 : f32
    %134 = vector.broadcast %cst_39 : f32 to vector<8x8xf32>
    %135 = arith.select %133, %118, %134 : vector<8x8xi1>, vector<8x8xf32>
    %cst_40 = arith.constant dense<0.000000e+00> : vector<8xf32>
    %136 = vector.multi_reduction <add>, %135, %cst_40 [1] : vector<8x8xf32> to vector<8xf32>
    %137 = vector.shape_cast %136 : vector<8xf32> to vector<8x1xf32>
    %138 = vector.extract_strided_slice %21 {offsets = [1, 0], sizes = [1, 16], strides = [1, 1]} : vector<9x16xf32> to vector<1x16xf32>
    %139 = vector.broadcast %137 : vector<8x1xf32> to vector<8x16xf32>
    %140 = vector.broadcast %138 : vector<1x16xf32> to vector<8x16xf32>
    %141 = arith.mulf %139, %140 : vector<8x16xf32>
    %142 = arith.addf %131, %141 : vector<8x16xf32>
    %c-2_i32_41 = arith.constant -2 : i32
    %143 = vector.broadcast %c-2_i32_41 : i32 to vector<8x8xi32>
    %144 = arith.cmpi eq, %14, %143 : vector<8x8xi32>
    %cst_42 = arith.constant 0.000000e+00 : f32
    %145 = vector.broadcast %cst_42 : f32 to vector<8x8xf32>
    %146 = arith.select %144, %118, %145 : vector<8x8xi1>, vector<8x8xf32>
    %cst_43 = arith.constant dense<0.000000e+00> : vector<8xf32>
    %147 = vector.multi_reduction <add>, %146, %cst_43 [1] : vector<8x8xf32> to vector<8xf32>
    %148 = vector.shape_cast %147 : vector<8xf32> to vector<8x1xf32>
    %149 = vector.extract_strided_slice %21 {offsets = [2, 0], sizes = [1, 16], strides = [1, 1]} : vector<9x16xf32> to vector<1x16xf32>
    %150 = vector.broadcast %148 : vector<8x1xf32> to vector<8x16xf32>
    %151 = vector.broadcast %149 : vector<1x16xf32> to vector<8x16xf32>
    %152 = arith.mulf %150, %151 : vector<8x16xf32>
    %153 = arith.addf %142, %152 : vector<8x16xf32>
    %c-1_i32_44 = arith.constant -1 : i32
    %154 = vector.broadcast %c-1_i32_44 : i32 to vector<8x8xi32>
    %155 = arith.cmpi eq, %14, %154 : vector<8x8xi32>
    %cst_45 = arith.constant 0.000000e+00 : f32
    %156 = vector.broadcast %cst_45 : f32 to vector<8x8xf32>
    %157 = arith.select %155, %118, %156 : vector<8x8xi1>, vector<8x8xf32>
    %cst_46 = arith.constant dense<0.000000e+00> : vector<8xf32>
    %158 = vector.multi_reduction <add>, %157, %cst_46 [1] : vector<8x8xf32> to vector<8xf32>
    %159 = vector.shape_cast %158 : vector<8xf32> to vector<8x1xf32>
    %160 = vector.extract_strided_slice %21 {offsets = [3, 0], sizes = [1, 16], strides = [1, 1]} : vector<9x16xf32> to vector<1x16xf32>
    %161 = vector.broadcast %159 : vector<8x1xf32> to vector<8x16xf32>
    %162 = vector.broadcast %160 : vector<1x16xf32> to vector<8x16xf32>
    %163 = arith.mulf %161, %162 : vector<8x16xf32>
    %164 = arith.addf %153, %163 : vector<8x16xf32>
    %c0_i32_47 = arith.constant 0 : i32
    %165 = vector.broadcast %c0_i32_47 : i32 to vector<8x8xi32>
    %166 = arith.cmpi eq, %14, %165 : vector<8x8xi32>
    %cst_48 = arith.constant 0.000000e+00 : f32
    %167 = vector.broadcast %cst_48 : f32 to vector<8x8xf32>
    %168 = arith.select %166, %118, %167 : vector<8x8xi1>, vector<8x8xf32>
    %cst_49 = arith.constant dense<0.000000e+00> : vector<8xf32>
    %169 = vector.multi_reduction <add>, %168, %cst_49 [1] : vector<8x8xf32> to vector<8xf32>
    %170 = vector.shape_cast %169 : vector<8xf32> to vector<8x1xf32>
    %171 = vector.extract_strided_slice %21 {offsets = [4, 0], sizes = [1, 16], strides = [1, 1]} : vector<9x16xf32> to vector<1x16xf32>
    %172 = vector.broadcast %170 : vector<8x1xf32> to vector<8x16xf32>
    %173 = vector.broadcast %171 : vector<1x16xf32> to vector<8x16xf32>
    %174 = arith.mulf %172, %173 : vector<8x16xf32>
    %175 = arith.addf %164, %174 : vector<8x16xf32>
    %c1_i32_50 = arith.constant 1 : i32
    %176 = vector.broadcast %c1_i32_50 : i32 to vector<8x8xi32>
    %177 = arith.cmpi eq, %14, %176 : vector<8x8xi32>
    %cst_51 = arith.constant 0.000000e+00 : f32
    %178 = vector.broadcast %cst_51 : f32 to vector<8x8xf32>
    %179 = arith.select %177, %118, %178 : vector<8x8xi1>, vector<8x8xf32>
    %cst_52 = arith.constant dense<0.000000e+00> : vector<8xf32>
    %180 = vector.multi_reduction <add>, %179, %cst_52 [1] : vector<8x8xf32> to vector<8xf32>
    %181 = vector.shape_cast %180 : vector<8xf32> to vector<8x1xf32>
    %182 = vector.extract_strided_slice %21 {offsets = [5, 0], sizes = [1, 16], strides = [1, 1]} : vector<9x16xf32> to vector<1x16xf32>
    %183 = vector.broadcast %181 : vector<8x1xf32> to vector<8x16xf32>
    %184 = vector.broadcast %182 : vector<1x16xf32> to vector<8x16xf32>
    %185 = arith.mulf %183, %184 : vector<8x16xf32>
    %186 = arith.addf %175, %185 : vector<8x16xf32>
    %c2_i32_53 = arith.constant 2 : i32
    %187 = vector.broadcast %c2_i32_53 : i32 to vector<8x8xi32>
    %188 = arith.cmpi eq, %14, %187 : vector<8x8xi32>
    %cst_54 = arith.constant 0.000000e+00 : f32
    %189 = vector.broadcast %cst_54 : f32 to vector<8x8xf32>
    %190 = arith.select %188, %118, %189 : vector<8x8xi1>, vector<8x8xf32>
    %cst_55 = arith.constant dense<0.000000e+00> : vector<8xf32>
    %191 = vector.multi_reduction <add>, %190, %cst_55 [1] : vector<8x8xf32> to vector<8xf32>
    %192 = vector.shape_cast %191 : vector<8xf32> to vector<8x1xf32>
    %193 = vector.extract_strided_slice %21 {offsets = [6, 0], sizes = [1, 16], strides = [1, 1]} : vector<9x16xf32> to vector<1x16xf32>
    %194 = vector.broadcast %192 : vector<8x1xf32> to vector<8x16xf32>
    %195 = vector.broadcast %193 : vector<1x16xf32> to vector<8x16xf32>
    %196 = arith.mulf %194, %195 : vector<8x16xf32>
    %197 = arith.addf %186, %196 : vector<8x16xf32>
    %c3_i32_56 = arith.constant 3 : i32
    %198 = vector.broadcast %c3_i32_56 : i32 to vector<8x8xi32>
    %199 = arith.cmpi eq, %14, %198 : vector<8x8xi32>
    %cst_57 = arith.constant 0.000000e+00 : f32
    %200 = vector.broadcast %cst_57 : f32 to vector<8x8xf32>
    %201 = arith.select %199, %118, %200 : vector<8x8xi1>, vector<8x8xf32>
    %cst_58 = arith.constant dense<0.000000e+00> : vector<8xf32>
    %202 = vector.multi_reduction <add>, %201, %cst_58 [1] : vector<8x8xf32> to vector<8xf32>
    %203 = vector.shape_cast %202 : vector<8xf32> to vector<8x1xf32>
    %204 = vector.extract_strided_slice %21 {offsets = [7, 0], sizes = [1, 16], strides = [1, 1]} : vector<9x16xf32> to vector<1x16xf32>
    %205 = vector.broadcast %203 : vector<8x1xf32> to vector<8x16xf32>
    %206 = vector.broadcast %204 : vector<1x16xf32> to vector<8x16xf32>
    %207 = arith.mulf %205, %206 : vector<8x16xf32>
    %208 = arith.addf %197, %207 : vector<8x16xf32>
    %c4_i32_59 = arith.constant 4 : i32
    %209 = vector.broadcast %c4_i32_59 : i32 to vector<8x8xi32>
    %210 = arith.cmpi eq, %14, %209 : vector<8x8xi32>
    %cst_60 = arith.constant 0.000000e+00 : f32
    %211 = vector.broadcast %cst_60 : f32 to vector<8x8xf32>
    %212 = arith.select %210, %118, %211 : vector<8x8xi1>, vector<8x8xf32>
    %cst_61 = arith.constant dense<0.000000e+00> : vector<8xf32>
    %213 = vector.multi_reduction <add>, %212, %cst_61 [1] : vector<8x8xf32> to vector<8xf32>
    %214 = vector.shape_cast %213 : vector<8xf32> to vector<8x1xf32>
    %215 = vector.extract_strided_slice %21 {offsets = [8, 0], sizes = [1, 16], strides = [1, 1]} : vector<9x16xf32> to vector<1x16xf32>
    %216 = vector.broadcast %214 : vector<8x1xf32> to vector<8x16xf32>
    %217 = vector.broadcast %215 : vector<1x16xf32> to vector<8x16xf32>
    %218 = arith.mulf %216, %217 : vector<8x16xf32>
    %219 = arith.addf %208, %218 : vector<8x16xf32>
    %220 = arith.truncf %219 : vector<8x16xf32> to vector<8x16xbf16>
    %c0_62 = arith.constant 0 : index
    %c0_63 = arith.constant 0 : index
    %c0_64 = arith.constant 0 : index
    %221 = vector.load %arg8[%c0_62, %c0_63, %c0_64] : memref<2x16x32xbf16, #tpu.memory_space<vmem>>, vector<1x16x32xbf16>
    %222 = vector.shape_cast %221 : vector<1x16x32xbf16> to vector<16x32xbf16>
    %cst_65 = arith.constant dense<0.000000e+00> : vector<8x32xf32>
    %223 = tpu.matmul %220, %222, %cst_65 {dimension_numbers = #tpu.dot_dimension_numbers<[1], [0], [0], [1], [0, 0, 1, 1], [], []>} : vector<8x16xbf16>, vector<16x32xbf16>, vector<8x32xf32> -> vector<8x32xf32>
    %224 = arith.addf %22, %223 : vector<8x32xf32>
    %225 = vector.extract_strided_slice %11 {offsets = [0, 16], sizes = [8, 16], strides = [1, 1]} : vector<8x96xf32> to vector<8x16xf32>
    %226 = arith.truncf %225 : vector<8x16xf32> to vector<8x16xbf16>
    %227 = vector.extract_strided_slice %11 {offsets = [0, 48], sizes = [8, 16], strides = [1, 1]} : vector<8x96xf32> to vector<8x16xf32>
    %228 = arith.truncf %227 : vector<8x16xf32> to vector<8x16xbf16>
    %229 = vector.extract_strided_slice %11 {offsets = [0, 80], sizes = [8, 16], strides = [1, 1]} : vector<8x96xf32> to vector<8x16xf32>
    %230 = arith.truncf %229 : vector<8x16xf32> to vector<8x16xbf16>
    "tpu.trace_start"() <{level = 10 : i32, message = "td,sd->ts"}> : () -> ()
    %cst_66 = arith.constant dense<0.000000e+00> : vector<8x8xf32>
    %231 = tpu.matmul %226, %228, %cst_66 {dimension_numbers = #tpu.dot_dimension_numbers<[1], [1], [0], [0], [0, 0, 1, 0], [], []>} : vector<8x16xbf16>, vector<8x16xbf16>, vector<8x8xf32> -> vector<8x8xf32>
    "tpu.trace_stop"() : () -> ()
    %cst_67 = arith.constant 2.500000e-01 : f32
    %232 = vector.broadcast %cst_67 : f32 to vector<8x8xf32>
    %233 = arith.mulf %231, %232 : vector<8x8xf32>
    %cst_68 = arith.constant dense<0.000000e+00> : vector<8x9xf32>
    %234 = tpu.matmul %226, %20, %cst_68 {dimension_numbers = #tpu.dot_dimension_numbers<[1], [0], [0], [1], [0, 0, 1, 1], [], []>} : vector<8x16xbf16>, vector<16x9xbf16>, vector<8x9xf32> -> vector<8x9xf32>
    %cst_69 = arith.constant 2.500000e-01 : f32
    %235 = vector.broadcast %cst_69 : f32 to vector<8x9xf32>
    %236 = arith.mulf %234, %235 : vector<8x9xf32>
    %c-4_i32_70 = arith.constant -4 : i32
    %237 = vector.broadcast %c-4_i32_70 : i32 to vector<8x8xi32>
    %238 = arith.cmpi eq, %14, %237 : vector<8x8xi32>
    %239 = vector.extract_strided_slice %236 {offsets = [0, 0], sizes = [8, 1], strides = [1, 1]} : vector<8x9xf32> to vector<8x1xf32>
    %cst_71 = arith.constant 0.000000e+00 : f32
    %240 = vector.shape_cast %239 : vector<8x1xf32> to vector<8x1xf32>
    %241 = vector.broadcast %240 : vector<8x1xf32> to vector<8x8xf32>
    %242 = vector.broadcast %cst_71 : f32 to vector<8x8xf32>
    %243 = arith.select %238, %241, %242 : vector<8x8xi1>, vector<8x8xf32>
    %244 = arith.addf %233, %243 : vector<8x8xf32>
    %c-3_i32_72 = arith.constant -3 : i32
    %245 = vector.broadcast %c-3_i32_72 : i32 to vector<8x8xi32>
    %246 = arith.cmpi eq, %14, %245 : vector<8x8xi32>
    %247 = vector.extract_strided_slice %236 {offsets = [0, 1], sizes = [8, 1], strides = [1, 1]} : vector<8x9xf32> to vector<8x1xf32>
    %cst_73 = arith.constant 0.000000e+00 : f32
    %248 = vector.shape_cast %247 : vector<8x1xf32> to vector<8x1xf32>
    %249 = vector.broadcast %248 : vector<8x1xf32> to vector<8x8xf32>
    %250 = vector.broadcast %cst_73 : f32 to vector<8x8xf32>
    %251 = arith.select %246, %249, %250 : vector<8x8xi1>, vector<8x8xf32>
    %252 = arith.addf %244, %251 : vector<8x8xf32>
    %c-2_i32_74 = arith.constant -2 : i32
    %253 = vector.broadcast %c-2_i32_74 : i32 to vector<8x8xi32>
    %254 = arith.cmpi eq, %14, %253 : vector<8x8xi32>
    %255 = vector.extract_strided_slice %236 {offsets = [0, 2], sizes = [8, 1], strides = [1, 1]} : vector<8x9xf32> to vector<8x1xf32>
    %cst_75 = arith.constant 0.000000e+00 : f32
    %256 = vector.shape_cast %255 : vector<8x1xf32> to vector<8x1xf32>
    %257 = vector.broadcast %256 : vector<8x1xf32> to vector<8x8xf32>
    %258 = vector.broadcast %cst_75 : f32 to vector<8x8xf32>
    %259 = arith.select %254, %257, %258 : vector<8x8xi1>, vector<8x8xf32>
    %260 = arith.addf %252, %259 : vector<8x8xf32>
    %c-1_i32_76 = arith.constant -1 : i32
    %261 = vector.broadcast %c-1_i32_76 : i32 to vector<8x8xi32>
    %262 = arith.cmpi eq, %14, %261 : vector<8x8xi32>
    %263 = vector.extract_strided_slice %236 {offsets = [0, 3], sizes = [8, 1], strides = [1, 1]} : vector<8x9xf32> to vector<8x1xf32>
    %cst_77 = arith.constant 0.000000e+00 : f32
    %264 = vector.shape_cast %263 : vector<8x1xf32> to vector<8x1xf32>
    %265 = vector.broadcast %264 : vector<8x1xf32> to vector<8x8xf32>
    %266 = vector.broadcast %cst_77 : f32 to vector<8x8xf32>
    %267 = arith.select %262, %265, %266 : vector<8x8xi1>, vector<8x8xf32>
    %268 = arith.addf %260, %267 : vector<8x8xf32>
    %c0_i32_78 = arith.constant 0 : i32
    %269 = vector.broadcast %c0_i32_78 : i32 to vector<8x8xi32>
    %270 = arith.cmpi eq, %14, %269 : vector<8x8xi32>
    %271 = vector.extract_strided_slice %236 {offsets = [0, 4], sizes = [8, 1], strides = [1, 1]} : vector<8x9xf32> to vector<8x1xf32>
    %cst_79 = arith.constant 0.000000e+00 : f32
    %272 = vector.shape_cast %271 : vector<8x1xf32> to vector<8x1xf32>
    %273 = vector.broadcast %272 : vector<8x1xf32> to vector<8x8xf32>
    %274 = vector.broadcast %cst_79 : f32 to vector<8x8xf32>
    %275 = arith.select %270, %273, %274 : vector<8x8xi1>, vector<8x8xf32>
    %276 = arith.addf %268, %275 : vector<8x8xf32>
    %c1_i32_80 = arith.constant 1 : i32
    %277 = vector.broadcast %c1_i32_80 : i32 to vector<8x8xi32>
    %278 = arith.cmpi eq, %14, %277 : vector<8x8xi32>
    %279 = vector.extract_strided_slice %236 {offsets = [0, 5], sizes = [8, 1], strides = [1, 1]} : vector<8x9xf32> to vector<8x1xf32>
    %cst_81 = arith.constant 0.000000e+00 : f32
    %280 = vector.shape_cast %279 : vector<8x1xf32> to vector<8x1xf32>
    %281 = vector.broadcast %280 : vector<8x1xf32> to vector<8x8xf32>
    %282 = vector.broadcast %cst_81 : f32 to vector<8x8xf32>
    %283 = arith.select %278, %281, %282 : vector<8x8xi1>, vector<8x8xf32>
    %284 = arith.addf %276, %283 : vector<8x8xf32>
    %c2_i32_82 = arith.constant 2 : i32
    %285 = vector.broadcast %c2_i32_82 : i32 to vector<8x8xi32>
    %286 = arith.cmpi eq, %14, %285 : vector<8x8xi32>
    %287 = vector.extract_strided_slice %236 {offsets = [0, 6], sizes = [8, 1], strides = [1, 1]} : vector<8x9xf32> to vector<8x1xf32>
    %cst_83 = arith.constant 0.000000e+00 : f32
    %288 = vector.shape_cast %287 : vector<8x1xf32> to vector<8x1xf32>
    %289 = vector.broadcast %288 : vector<8x1xf32> to vector<8x8xf32>
    %290 = vector.broadcast %cst_83 : f32 to vector<8x8xf32>
    %291 = arith.select %286, %289, %290 : vector<8x8xi1>, vector<8x8xf32>
    %292 = arith.addf %284, %291 : vector<8x8xf32>
    %c3_i32_84 = arith.constant 3 : i32
    %293 = vector.broadcast %c3_i32_84 : i32 to vector<8x8xi32>
    %294 = arith.cmpi eq, %14, %293 : vector<8x8xi32>
    %295 = vector.extract_strided_slice %236 {offsets = [0, 7], sizes = [8, 1], strides = [1, 1]} : vector<8x9xf32> to vector<8x1xf32>
    %cst_85 = arith.constant 0.000000e+00 : f32
    %296 = vector.shape_cast %295 : vector<8x1xf32> to vector<8x1xf32>
    %297 = vector.broadcast %296 : vector<8x1xf32> to vector<8x8xf32>
    %298 = vector.broadcast %cst_85 : f32 to vector<8x8xf32>
    %299 = arith.select %294, %297, %298 : vector<8x8xi1>, vector<8x8xf32>
    %300 = arith.addf %292, %299 : vector<8x8xf32>
    %c4_i32_86 = arith.constant 4 : i32
    %301 = vector.broadcast %c4_i32_86 : i32 to vector<8x8xi32>
    %302 = arith.cmpi eq, %14, %301 : vector<8x8xi32>
    %303 = vector.extract_strided_slice %236 {offsets = [0, 8], sizes = [8, 1], strides = [1, 1]} : vector<8x9xf32> to vector<8x1xf32>
    %cst_87 = arith.constant 0.000000e+00 : f32
    %304 = vector.shape_cast %303 : vector<8x1xf32> to vector<8x1xf32>
    %305 = vector.broadcast %304 : vector<8x1xf32> to vector<8x8xf32>
    %306 = vector.broadcast %cst_87 : f32 to vector<8x8xf32>
    %307 = arith.select %302, %305, %306 : vector<8x8xi1>, vector<8x8xf32>
    %308 = arith.addf %300, %307 : vector<8x8xf32>
    %cst_88 = arith.constant -1.000000e+04 : f32
    %309 = vector.broadcast %cst_88 : f32 to vector<8x8xf32>
    %310 = arith.select %19, %308, %309 : vector<8x8xi1>, vector<8x8xf32>
    %cst_89 = arith.constant dense<0xFF800000> : vector<8xf32>
    %311 = vector.multi_reduction <maximumf>, %310, %cst_89 [1] : vector<8x8xf32> to vector<8xf32>
    %312 = vector.shape_cast %311 : vector<8xf32> to vector<8x1xf32>
    %313 = vector.broadcast %312 : vector<8x1xf32> to vector<8x8xf32>
    %314 = arith.subf %310, %313 : vector<8x8xf32>
    %315 = math.exp %314 : vector<8x8xf32>
    %cst_90 = arith.constant dense<0.000000e+00> : vector<8xf32>
    %316 = vector.multi_reduction <add>, %315, %cst_90 [1] : vector<8x8xf32> to vector<8xf32>
    %317 = vector.shape_cast %316 : vector<8xf32> to vector<8x1xf32>
    %318 = tpu.reciprocal %317 {approx = true} : vector<8x1xf32> -> vector<8x1xf32>
    %319 = vector.broadcast %318 : vector<8x1xf32> to vector<8x8xf32>
    %320 = arith.mulf %315, %319 : vector<8x8xf32>
    %321 = arith.truncf %320 : vector<8x8xf32> to vector<8x8xbf16>
    %cst_91 = arith.constant dense<0.000000e+00> : vector<8x16xf32>
    %322 = tpu.matmul %321, %230, %cst_91 {dimension_numbers = #tpu.dot_dimension_numbers<[1], [0], [0], [1], [0, 0, 1, 1], [], []>} : vector<8x8xbf16>, vector<8x16xbf16>, vector<8x16xf32> -> vector<8x16xf32>
    %c-4_i32_92 = arith.constant -4 : i32
    %323 = vector.broadcast %c-4_i32_92 : i32 to vector<8x8xi32>
    %324 = arith.cmpi eq, %14, %323 : vector<8x8xi32>
    %cst_93 = arith.constant 0.000000e+00 : f32
    %325 = vector.broadcast %cst_93 : f32 to vector<8x8xf32>
    %326 = arith.select %324, %320, %325 : vector<8x8xi1>, vector<8x8xf32>
    %cst_94 = arith.constant dense<0.000000e+00> : vector<8xf32>
    %327 = vector.multi_reduction <add>, %326, %cst_94 [1] : vector<8x8xf32> to vector<8xf32>
    %328 = vector.shape_cast %327 : vector<8xf32> to vector<8x1xf32>
    %329 = vector.extract_strided_slice %21 {offsets = [0, 0], sizes = [1, 16], strides = [1, 1]} : vector<9x16xf32> to vector<1x16xf32>
    %330 = vector.broadcast %328 : vector<8x1xf32> to vector<8x16xf32>
    %331 = vector.broadcast %329 : vector<1x16xf32> to vector<8x16xf32>
    %332 = arith.mulf %330, %331 : vector<8x16xf32>
    %333 = arith.addf %322, %332 : vector<8x16xf32>
    %c-3_i32_95 = arith.constant -3 : i32
    %334 = vector.broadcast %c-3_i32_95 : i32 to vector<8x8xi32>
    %335 = arith.cmpi eq, %14, %334 : vector<8x8xi32>
    %cst_96 = arith.constant 0.000000e+00 : f32
    %336 = vector.broadcast %cst_96 : f32 to vector<8x8xf32>
    %337 = arith.select %335, %320, %336 : vector<8x8xi1>, vector<8x8xf32>
    %cst_97 = arith.constant dense<0.000000e+00> : vector<8xf32>
    %338 = vector.multi_reduction <add>, %337, %cst_97 [1] : vector<8x8xf32> to vector<8xf32>
    %339 = vector.shape_cast %338 : vector<8xf32> to vector<8x1xf32>
    %340 = vector.extract_strided_slice %21 {offsets = [1, 0], sizes = [1, 16], strides = [1, 1]} : vector<9x16xf32> to vector<1x16xf32>
    %341 = vector.broadcast %339 : vector<8x1xf32> to vector<8x16xf32>
    %342 = vector.broadcast %340 : vector<1x16xf32> to vector<8x16xf32>
    %343 = arith.mulf %341, %342 : vector<8x16xf32>
    %344 = arith.addf %333, %343 : vector<8x16xf32>
    %c-2_i32_98 = arith.constant -2 : i32
    %345 = vector.broadcast %c-2_i32_98 : i32 to vector<8x8xi32>
    %346 = arith.cmpi eq, %14, %345 : vector<8x8xi32>
    %cst_99 = arith.constant 0.000000e+00 : f32
    %347 = vector.broadcast %cst_99 : f32 to vector<8x8xf32>
    %348 = arith.select %346, %320, %347 : vector<8x8xi1>, vector<8x8xf32>
    %cst_100 = arith.constant dense<0.000000e+00> : vector<8xf32>
    %349 = vector.multi_reduction <add>, %348, %cst_100 [1] : vector<8x8xf32> to vector<8xf32>
    %350 = vector.shape_cast %349 : vector<8xf32> to vector<8x1xf32>
    %351 = vector.extract_strided_slice %21 {offsets = [2, 0], sizes = [1, 16], strides = [1, 1]} : vector<9x16xf32> to vector<1x16xf32>
    %352 = vector.broadcast %350 : vector<8x1xf32> to vector<8x16xf32>
    %353 = vector.broadcast %351 : vector<1x16xf32> to vector<8x16xf32>
    %354 = arith.mulf %352, %353 : vector<8x16xf32>
    %355 = arith.addf %344, %354 : vector<8x16xf32>
    %c-1_i32_101 = arith.constant -1 : i32
    %356 = vector.broadcast %c-1_i32_101 : i32 to vector<8x8xi32>
    %357 = arith.cmpi eq, %14, %356 : vector<8x8xi32>
    %cst_102 = arith.constant 0.000000e+00 : f32
    %358 = vector.broadcast %cst_102 : f32 to vector<8x8xf32>
    %359 = arith.select %357, %320, %358 : vector<8x8xi1>, vector<8x8xf32>
    %cst_103 = arith.constant dense<0.000000e+00> : vector<8xf32>
    %360 = vector.multi_reduction <add>, %359, %cst_103 [1] : vector<8x8xf32> to vector<8xf32>
    %361 = vector.shape_cast %360 : vector<8xf32> to vector<8x1xf32>
    %362 = vector.extract_strided_slice %21 {offsets = [3, 0], sizes = [1, 16], strides = [1, 1]} : vector<9x16xf32> to vector<1x16xf32>
    %363 = vector.broadcast %361 : vector<8x1xf32> to vector<8x16xf32>
    %364 = vector.broadcast %362 : vector<1x16xf32> to vector<8x16xf32>
    %365 = arith.mulf %363, %364 : vector<8x16xf32>
    %366 = arith.addf %355, %365 : vector<8x16xf32>
    %c0_i32_104 = arith.constant 0 : i32
    %367 = vector.broadcast %c0_i32_104 : i32 to vector<8x8xi32>
    %368 = arith.cmpi eq, %14, %367 : vector<8x8xi32>
    %cst_105 = arith.constant 0.000000e+00 : f32
    %369 = vector.broadcast %cst_105 : f32 to vector<8x8xf32>
    %370 = arith.select %368, %320, %369 : vector<8x8xi1>, vector<8x8xf32>
    %cst_106 = arith.constant dense<0.000000e+00> : vector<8xf32>
    %371 = vector.multi_reduction <add>, %370, %cst_106 [1] : vector<8x8xf32> to vector<8xf32>
    %372 = vector.shape_cast %371 : vector<8xf32> to vector<8x1xf32>
    %373 = vector.extract_strided_slice %21 {offsets = [4, 0], sizes = [1, 16], strides = [1, 1]} : vector<9x16xf32> to vector<1x16xf32>
    %374 = vector.broadcast %372 : vector<8x1xf32> to vector<8x16xf32>
    %375 = vector.broadcast %373 : vector<1x16xf32> to vector<8x16xf32>
    %376 = arith.mulf %374, %375 : vector<8x16xf32>
    %377 = arith.addf %366, %376 : vector<8x16xf32>
    %c1_i32_107 = arith.constant 1 : i32
    %378 = vector.broadcast %c1_i32_107 : i32 to vector<8x8xi32>
    %379 = arith.cmpi eq, %14, %378 : vector<8x8xi32>
    %cst_108 = arith.constant 0.000000e+00 : f32
    %380 = vector.broadcast %cst_108 : f32 to vector<8x8xf32>
    %381 = arith.select %379, %320, %380 : vector<8x8xi1>, vector<8x8xf32>
    %cst_109 = arith.constant dense<0.000000e+00> : vector<8xf32>
    %382 = vector.multi_reduction <add>, %381, %cst_109 [1] : vector<8x8xf32> to vector<8xf32>
    %383 = vector.shape_cast %382 : vector<8xf32> to vector<8x1xf32>
    %384 = vector.extract_strided_slice %21 {offsets = [5, 0], sizes = [1, 16], strides = [1, 1]} : vector<9x16xf32> to vector<1x16xf32>
    %385 = vector.broadcast %383 : vector<8x1xf32> to vector<8x16xf32>
    %386 = vector.broadcast %384 : vector<1x16xf32> to vector<8x16xf32>
    %387 = arith.mulf %385, %386 : vector<8x16xf32>
    %388 = arith.addf %377, %387 : vector<8x16xf32>
    %c2_i32_110 = arith.constant 2 : i32
    %389 = vector.broadcast %c2_i32_110 : i32 to vector<8x8xi32>
    %390 = arith.cmpi eq, %14, %389 : vector<8x8xi32>
    %cst_111 = arith.constant 0.000000e+00 : f32
    %391 = vector.broadcast %cst_111 : f32 to vector<8x8xf32>
    %392 = arith.select %390, %320, %391 : vector<8x8xi1>, vector<8x8xf32>
    %cst_112 = arith.constant dense<0.000000e+00> : vector<8xf32>
    %393 = vector.multi_reduction <add>, %392, %cst_112 [1] : vector<8x8xf32> to vector<8xf32>
    %394 = vector.shape_cast %393 : vector<8xf32> to vector<8x1xf32>
    %395 = vector.extract_strided_slice %21 {offsets = [6, 0], sizes = [1, 16], strides = [1, 1]} : vector<9x16xf32> to vector<1x16xf32>
    %396 = vector.broadcast %394 : vector<8x1xf32> to vector<8x16xf32>
    %397 = vector.broadcast %395 : vector<1x16xf32> to vector<8x16xf32>
    %398 = arith.mulf %396, %397 : vector<8x16xf32>
    %399 = arith.addf %388, %398 : vector<8x16xf32>
    %c3_i32_113 = arith.constant 3 : i32
    %400 = vector.broadcast %c3_i32_113 : i32 to vector<8x8xi32>
    %401 = arith.cmpi eq, %14, %400 : vector<8x8xi32>
    %cst_114 = arith.constant 0.000000e+00 : f32
    %402 = vector.broadcast %cst_114 : f32 to vector<8x8xf32>
    %403 = arith.select %401, %320, %402 : vector<8x8xi1>, vector<8x8xf32>
    %cst_115 = arith.constant dense<0.000000e+00> : vector<8xf32>
    %404 = vector.multi_reduction <add>, %403, %cst_115 [1] : vector<8x8xf32> to vector<8xf32>
    %405 = vector.shape_cast %404 : vector<8xf32> to vector<8x1xf32>
    %406 = vector.extract_strided_slice %21 {offsets = [7, 0], sizes = [1, 16], strides = [1, 1]} : vector<9x16xf32> to vector<1x16xf32>
    %407 = vector.broadcast %405 : vector<8x1xf32> to vector<8x16xf32>
    %408 = vector.broadcast %406 : vector<1x16xf32> to vector<8x16xf32>
    %409 = arith.mulf %407, %408 : vector<8x16xf32>
    %410 = arith.addf %399, %409 : vector<8x16xf32>
    %c4_i32_116 = arith.constant 4 : i32
    %411 = vector.broadcast %c4_i32_116 : i32 to vector<8x8xi32>
    %412 = arith.cmpi eq, %14, %411 : vector<8x8xi32>
    %cst_117 = arith.constant 0.000000e+00 : f32
    %413 = vector.broadcast %cst_117 : f32 to vector<8x8xf32>
    %414 = arith.select %412, %320, %413 : vector<8x8xi1>, vector<8x8xf32>
    %cst_118 = arith.constant dense<0.000000e+00> : vector<8xf32>
    %415 = vector.multi_reduction <add>, %414, %cst_118 [1] : vector<8x8xf32> to vector<8xf32>
    %416 = vector.shape_cast %415 : vector<8xf32> to vector<8x1xf32>
    %417 = vector.extract_strided_slice %21 {offsets = [8, 0], sizes = [1, 16], strides = [1, 1]} : vector<9x16xf32> to vector<1x16xf32>
    %418 = vector.broadcast %416 : vector<8x1xf32> to vector<8x16xf32>
    %419 = vector.broadcast %417 : vector<1x16xf32> to vector<8x16xf32>
    %420 = arith.mulf %418, %419 : vector<8x16xf32>
    %421 = arith.addf %410, %420 : vector<8x16xf32>
    %422 = arith.truncf %421 : vector<8x16xf32> to vector<8x16xbf16>
    %c1 = arith.constant 1 : index
    %c0_119 = arith.constant 0 : index
    %c0_120 = arith.constant 0 : index
    %423 = vector.load %arg8[%c1, %c0_119, %c0_120] : memref<2x16x32xbf16, #tpu.memory_space<vmem>>, vector<1x16x32xbf16>
    %424 = vector.shape_cast %423 : vector<1x16x32xbf16> to vector<16x32xbf16>
    %cst_121 = arith.constant dense<0.000000e+00> : vector<8x32xf32>
    %425 = tpu.matmul %422, %424, %cst_121 {dimension_numbers = #tpu.dot_dimension_numbers<[1], [0], [0], [1], [0, 0, 1, 1], [], []>} : vector<8x16xbf16>, vector<16x32xbf16>, vector<8x32xf32> -> vector<8x32xf32>
    %426 = arith.addf %224, %425 : vector<8x32xf32>
    %c0_122 = arith.constant 0 : index
    %c0_123 = arith.constant 0 : index
    %427 = vector.load %arg9[%c0_122, %c0_123] : memref<1x32xf32, #tpu.memory_space<vmem>>, vector<1x32xf32>
    %428 = vector.broadcast %427 : vector<1x32xf32> to vector<8x32xf32>
    %429 = arith.addf %426, %428 : vector<8x32xf32>
    %430 = arith.addf %1, %429 : vector<8x32xf32>
    %cst_124 = arith.constant dense<0.000000e+00> : vector<8xf32>
    %431 = vector.multi_reduction <add>, %430, %cst_124 [1] : vector<8x32xf32> to vector<8xf32>
    %432 = vector.shape_cast %431 : vector<8xf32> to vector<8x1xf32>
    %cst_125 = arith.constant 3.200000e+01 : f32
    %433 = vector.broadcast %cst_125 : f32 to vector<8x1xf32>
    %434 = arith.divf %432, %433 : vector<8x1xf32>
    %435 = vector.broadcast %434 : vector<8x1xf32> to vector<8x32xf32>
    %436 = arith.subf %430, %435 : vector<8x32xf32>
    %437 = arith.mulf %436, %436 : vector<8x32xf32>
    %cst_126 = arith.constant dense<0.000000e+00> : vector<8xf32>
    %438 = vector.multi_reduction <add>, %437, %cst_126 [1] : vector<8x32xf32> to vector<8xf32>
    %439 = vector.shape_cast %438 : vector<8xf32> to vector<8x1xf32>
    %cst_127 = arith.constant 3.200000e+01 : f32
    %440 = vector.broadcast %cst_127 : f32 to vector<8x1xf32>
    %441 = arith.divf %439, %440 : vector<8x1xf32>
    %442 = vector.broadcast %434 : vector<8x1xf32> to vector<8x32xf32>
    %443 = arith.subf %430, %442 : vector<8x32xf32>
    %cst_128 = arith.constant 9.99999974E-6 : f32
    %444 = vector.broadcast %cst_128 : f32 to vector<8x1xf32>
    %445 = arith.addf %441, %444 : vector<8x1xf32>
    %446 = math.rsqrt %445 : vector<8x1xf32>
    %447 = vector.broadcast %446 : vector<8x1xf32> to vector<8x32xf32>
    %448 = arith.mulf %443, %447 : vector<8x32xf32>
    %c0_129 = arith.constant 0 : index
    %c0_130 = arith.constant 0 : index
    %449 = vector.load %arg10[%c0_129, %c0_130] : memref<1x32xf32, #tpu.memory_space<vmem>>, vector<1x32xf32>
    %450 = vector.broadcast %449 : vector<1x32xf32> to vector<8x32xf32>
    %451 = arith.mulf %448, %450 : vector<8x32xf32>
    %c0_131 = arith.constant 0 : index
    %c0_132 = arith.constant 0 : index
    %452 = vector.load %arg11[%c0_131, %c0_132] : memref<1x32xf32, #tpu.memory_space<vmem>>, vector<1x32xf32>
    %453 = vector.broadcast %452 : vector<1x32xf32> to vector<8x32xf32>
    %454 = arith.addf %451, %453 : vector<8x32xf32>
    %455 = vector.broadcast %3 : vector<8x1xf32> to vector<8x32xf32>
    %456 = arith.mulf %454, %455 : vector<8x32xf32>
    %457 = arith.truncf %456 : vector<8x32xf32> to vector<8x32xbf16>
    %c0_133 = arith.constant 0 : index
    %c0_134 = arith.constant 0 : index
    %458 = vector.load %arg12[%c0_133, %c0_134] : memref<32x64xbf16, #tpu.memory_space<vmem>>, vector<32x64xbf16>
    %cst_135 = arith.constant dense<0.000000e+00> : vector<8x64xf32>
    %459 = tpu.matmul %457, %458, %cst_135 {dimension_numbers = #tpu.dot_dimension_numbers<[1], [0], [0], [1], [0, 0, 1, 1], [], []>} : vector<8x32xbf16>, vector<32x64xbf16>, vector<8x64xf32> -> vector<8x64xf32>
    %c0_136 = arith.constant 0 : index
    %c0_137 = arith.constant 0 : index
    %460 = vector.load %arg13[%c0_136, %c0_137] : memref<1x64xf32, #tpu.memory_space<vmem>>, vector<1x64xf32>
    %461 = vector.broadcast %460 : vector<1x64xf32> to vector<8x64xf32>
    %462 = arith.addf %459, %461 : vector<8x64xf32>
    %cst_138 = arith.constant 0.000000e+00 : f32
    %463 = vector.broadcast %cst_138 : f32 to vector<8x64xf32>
    %464 = arith.maximumf %462, %463 : vector<8x64xf32>
    %465 = vector.broadcast %3 : vector<8x1xf32> to vector<8x64xf32>
    %466 = arith.mulf %464, %465 : vector<8x64xf32>
    %467 = arith.truncf %466 : vector<8x64xf32> to vector<8x64xbf16>
    %c0_139 = arith.constant 0 : index
    %c0_140 = arith.constant 0 : index
    %468 = vector.load %arg14[%c0_139, %c0_140] : memref<64x32xbf16, #tpu.memory_space<vmem>>, vector<64x32xbf16>
    %cst_141 = arith.constant dense<0.000000e+00> : vector<8x32xf32>
    %469 = tpu.matmul %467, %468, %cst_141 {dimension_numbers = #tpu.dot_dimension_numbers<[1], [0], [0], [1], [0, 0, 1, 1], [], []>} : vector<8x64xbf16>, vector<64x32xbf16>, vector<8x32xf32> -> vector<8x32xf32>
    %c0_142 = arith.constant 0 : index
    %c0_143 = arith.constant 0 : index
    %470 = vector.load %arg15[%c0_142, %c0_143] : memref<1x32xf32, #tpu.memory_space<vmem>>, vector<1x32xf32>
    %471 = vector.broadcast %470 : vector<1x32xf32> to vector<8x32xf32>
    %472 = arith.addf %469, %471 : vector<8x32xf32>
    %473 = vector.broadcast %3 : vector<8x1xf32> to vector<8x32xf32>
    %474 = arith.mulf %472, %473 : vector<8x32xf32>
    %475 = arith.addf %454, %474 : vector<8x32xf32>
    %cst_144 = arith.constant dense<0.000000e+00> : vector<8xf32>
    %476 = vector.multi_reduction <add>, %475, %cst_144 [1] : vector<8x32xf32> to vector<8xf32>
    %477 = vector.shape_cast %476 : vector<8xf32> to vector<8x1xf32>
    %cst_145 = arith.constant 3.200000e+01 : f32
    %478 = vector.broadcast %cst_145 : f32 to vector<8x1xf32>
    %479 = arith.divf %477, %478 : vector<8x1xf32>
    %480 = vector.broadcast %479 : vector<8x1xf32> to vector<8x32xf32>
    %481 = arith.subf %475, %480 : vector<8x32xf32>
    %482 = arith.mulf %481, %481 : vector<8x32xf32>
    %cst_146 = arith.constant dense<0.000000e+00> : vector<8xf32>
    %483 = vector.multi_reduction <add>, %482, %cst_146 [1] : vector<8x32xf32> to vector<8xf32>
    %484 = vector.shape_cast %483 : vector<8xf32> to vector<8x1xf32>
    %cst_147 = arith.constant 3.200000e+01 : f32
    %485 = vector.broadcast %cst_147 : f32 to vector<8x1xf32>
    %486 = arith.divf %484, %485 : vector<8x1xf32>
    %487 = vector.broadcast %479 : vector<8x1xf32> to vector<8x32xf32>
    %488 = arith.subf %475, %487 : vector<8x32xf32>
    %cst_148 = arith.constant 9.99999974E-6 : f32
    %489 = vector.broadcast %cst_148 : f32 to vector<8x1xf32>
    %490 = arith.addf %486, %489 : vector<8x1xf32>
    %491 = math.rsqrt %490 : vector<8x1xf32>
    %492 = vector.broadcast %491 : vector<8x1xf32> to vector<8x32xf32>
    %493 = arith.mulf %488, %492 : vector<8x32xf32>
    %c0_149 = arith.constant 0 : index
    %c0_150 = arith.constant 0 : index
    %494 = vector.load %arg16[%c0_149, %c0_150] : memref<1x32xf32, #tpu.memory_space<vmem>>, vector<1x32xf32>
    %495 = vector.broadcast %494 : vector<1x32xf32> to vector<8x32xf32>
    %496 = arith.mulf %493, %495 : vector<8x32xf32>
    %c0_151 = arith.constant 0 : index
    %c0_152 = arith.constant 0 : index
    %497 = vector.load %arg17[%c0_151, %c0_152] : memref<1x32xf32, #tpu.memory_space<vmem>>, vector<1x32xf32>
    %498 = vector.broadcast %497 : vector<1x32xf32> to vector<8x32xf32>
    %499 = arith.addf %496, %498 : vector<8x32xf32>
    %c0_153 = arith.constant 0 : index
    %c0_154 = arith.constant 0 : index
    %c0_155 = arith.constant 0 : index
    %500 = vector.load %arg18[%c0_153, %c0_154, %c0_155] : memref<1x8x32xf32, #tpu.memory_space<vmem>>, vector<1x8x32xf32>
    %501 = vector.shape_cast %500 : vector<1x8x32xf32> to vector<8x32xf32>
    %502 = vector.shape_cast %499 : vector<8x32xf32> to vector<1x8x32xf32>
    tpu.vector_store %arg18[%c0_153, %c0_154, %c0_155], %502 {strides = array<i32>} : memref<1x8x32xf32, #tpu.memory_space<vmem>>, vector<1x8x32xf32>,
    return
  }
  func.func @transform_0(%arg0: i32) -> (i32, i32, i32) {
    %c0_i32 = arith.constant 0 : i32
    %c0_i32_0 = arith.constant 0 : i32
    %c0_i32_1 = arith.constant 0 : i32
    return %arg0, %c0_i32, %c0_i32_0 : i32, i32, i32
  }
  func.func @transform_1(%arg0: i32) -> (i32, i32, i32) {
    %c0_i32 = arith.constant 0 : i32
    %c0_i32_0 = arith.constant 0 : i32
    %c0_i32_1 = arith.constant 0 : i32
    return %arg0, %c0_i32, %c0_i32_0 : i32, i32, i32
  }
  func.func @transform_2(%arg0: i32) -> (i32, i32, i32) {
    %c0_i32 = arith.constant 0 : i32
    %c0_i32_0 = arith.constant 0 : i32
    %c0_i32_1 = arith.constant 0 : i32
    return %arg0, %c0_i32, %c0_i32_0 : i32, i32, i32
  }
  func.func @transform_3(%arg0: i32) -> (i32, i32) {
    %c0_i32 = arith.constant 0 : i32
    %c0_i32_0 = arith.constant 0 : i32
    %c0_i32_1 = arith.constant 0 : i32
    return %c0_i32, %c0_i32_0 : i32, i32
  }
  func.func @transform_4(%arg0: i32) -> (i32, i32) {
    %c0_i32 = arith.constant 0 : i32
    %c0_i32_0 = arith.constant 0 : i32
    %c0_i32_1 = arith.constant 0 : i32
    return %c0_i32, %c0_i32_0 : i32, i32
  }
  func.func @transform_5(%arg0: i32) -> (i32, i32) {
    %c0_i32 = arith.constant 0 : i32
    %c0_i32_0 = arith.constant 0 : i32
    %c0_i32_1 = arith.constant 0 : i32
    return %c0_i32, %c0_i32_0 : i32, i32
  }
  func.func @transform_6(%arg0: i32) -> (i32, i32) {
    %c0_i32 = arith.constant 0 : i32
    %c0_i32_0 = arith.constant 0 : i32
    %c0_i32_1 = arith.constant 0 : i32
    return %c0_i32, %c0_i32_0 : i32, i32
  }
  func.func @transform_7(%arg0: i32) -> (i32, i32, i32) {
    %c0_i32 = arith.constant 0 : i32
    %c0_i32_0 = arith.constant 0 : i32
    %c0_i32_1 = arith.constant 0 : i32
    %c0_i32_2 = arith.constant 0 : i32
    return %c0_i32, %c0_i32_0, %c0_i32_1 : i32, i32, i32
  }
  func.func @transform_8(%arg0: i32) -> (i32, i32) {
    %c0_i32 = arith.constant 0 : i32
    %c0_i32_0 = arith.constant 0 : i32
    %c0_i32_1 = arith.constant 0 : i32
    return %c0_i32, %c0_i32_0 : i32, i32
  }
  func.func @transform_9(%arg0: i32) -> (i32, i32) {
    %c0_i32 = arith.constant 0 : i32
    %c0_i32_0 = arith.constant 0 : i32
    %c0_i32_1 = arith.constant 0 : i32
    return %c0_i32, %c0_i32_0 : i32, i32
  }
  func.func @transform_10(%arg0: i32) -> (i32, i32) {
    %c0_i32 = arith.constant 0 : i32
    %c0_i32_0 = arith.constant 0 : i32
    %c0_i32_1 = arith.constant 0 : i32
    return %c0_i32, %c0_i32_0 : i32, i32
  }
  func.func @transform_11(%arg0: i32) -> (i32, i32) {
    %c0_i32 = arith.constant 0 : i32
    %c0_i32_0 = arith.constant 0 : i32
    %c0_i32_1 = arith.constant 0 : i32
    return %c0_i32, %c0_i32_0 : i32, i32
  }
  func.func @transform_12(%arg0: i32) -> (i32, i32) {
    %c0_i32 = arith.constant 0 : i32
    %c0_i32_0 = arith.constant 0 : i32
    %c0_i32_1 = arith.constant 0 : i32
    return %c0_i32, %c0_i32_0 : i32, i32
  }
  func.func @transform_13(%arg0: i32) -> (i32, i32) {
    %c0_i32 = arith.constant 0 : i32
    %c0_i32_0 = arith.constant 0 : i32
    %c0_i32_1 = arith.constant 0 : i32
    return %c0_i32, %c0_i32_0 : i32, i32
  }
  func.func @transform_14(%arg0: i32) -> (i32, i32) {
    %c0_i32 = arith.constant 0 : i32
    %c0_i32_0 = arith.constant 0 : i32
    %c0_i32_1 = arith.constant 0 : i32
    return %c0_i32, %c0_i32_0 : i32, i32
  }
  func.func @transform_15(%arg0: i32) -> (i32, i32) {
    %c0_i32 = arith.constant 0 : i32
    %c0_i32_0 = arith.constant 0 : i32
    %c0_i32_1 = arith.constant 0 : i32
    return %c0_i32, %c0_i32_0 : i32, i32
  }
  func.func @transform_16(%arg0: i32) -> (i32, i32) {
    %c0_i32 = arith.constant 0 : i32
    %c0_i32_0 = arith.constant 0 : i32
    %c0_i32_1 = arith.constant 0 : i32
    return %c0_i32, %c0_i32_0 : i32, i32
  }
  func.func @transform_17(%arg0: i32) -> (i32, i32, i32) {
    %c0_i32 = arith.constant 0 : i32
    %c0_i32_0 = arith.constant 0 : i32
    %c0_i32_1 = arith.constant 0 : i32
    return %arg0, %c0_i32, %c0_i32_0 : i32, i32, i32
  }
}

</mosaic_0001>

<llo_original>
// kernel: tpu_custom_call.1
$region0: #{tpu_custom_call.1}
  #allocation0 [shape = 'u32[]', space=smem, size = 0x4, offset = 0x4, fixed_abs, tag = 'smem constant byte address 0x4 - core index']
  #allocation1 [shape = 'u32[72,128]{1,0:T(1,128)}', space=vmem, size = 0x9000, scoped, tag = 'internal scratch']
  %s0 = inlined_call_operand.vmem [shape: f32[2,8,32], index: 0, kind: input, shape index: {}]
  %s1 = inlined_call_operand.vmem [shape: f32[2,8,1], index: 1, kind: input, shape index: {}]
  %s2 = inlined_call_operand.vmem [shape: f32[2,1,8], index: 2, kind: input, shape index: {}]
  %s3 = inlined_call_operand.vmem [shape: bf16[16,9], index: 3, kind: input, shape index: {}]
  %s4 = inlined_call_operand.vmem [shape: f32[9,16], index: 4, kind: input, shape index: {}]
  %s5 = inlined_call_operand.vmem [shape: bf16[32,96], index: 5, kind: input, shape index: {}]
  %s6 = inlined_call_operand.vmem [shape: f32[1,96], index: 6, kind: input, shape index: {}]
  %s7 = inlined_call_operand.hbm [shape: bf16[2,16,32], index: 7, kind: input, shape index: {}]
  %s8 = inlined_call_operand.vmem [shape: f32[1,32], index: 8, kind: input, shape index: {}]
  %s9 = inlined_call_operand.vmem [shape: f32[1,32], index: 9, kind: input, shape index: {}]
  %s10 = inlined_call_operand.vmem [shape: f32[1,32], index: 10, kind: input, shape index: {}]
  %s11 = inlined_call_operand.hbm [shape: bf16[32,64], index: 11, kind: input, shape index: {}]
  %s12 = inlined_call_operand.hbm [shape: f32[1,64], index: 12, kind: input, shape index: {}]
  %s13 = inlined_call_operand.vmem [shape: bf16[64,32], index: 13, kind: input, shape index: {}]
  %s14 = inlined_call_operand.vmem [shape: f32[1,32], index: 14, kind: input, shape index: {}]
  %s15 = inlined_call_operand.vmem [shape: f32[1,32], index: 15, kind: input, shape index: {}]
  %s16 = inlined_call_operand.vmem [shape: f32[1,32], index: 16, kind: input, shape index: {}]
  %s17 = inlined_call_operand.hbm [shape: f32[2,8,32], index: 17, kind: output, shape index: {}]
  %s18 = sld [smem:[#allocation0]]
  $region113: #{tpu_custom_call.1} parent=0
    _
  %s20 = ssub.s32 1, %s18
  %s21 = scalar_select 0, %s20, %s18
  $region1: #{tpu_custom_call.1} parent=0
    #allocation2 [shape = 'u8[8192]{0}', space=vmem, size = 0x2000, scoped, tag = 'input window, operand 7, single buffered']
    #allocation3 [shape = 's32[2]{0}', space=sflag, size = 0x8, scoped, tag = 'scoped memory for tpu_custom_call.1']
    #allocation4 [shape = 's32[2]{0}', space=sflag, size = 0x8, scoped, tag = 'scoped memory for tpu_custom_call.1']
    #allocation5 [shape = 'u8[8192]{0}', space=vmem, size = 0x2000, scoped, tag = 'input window, operand 11, single buffered']
    #allocation6 [shape = 's32[1]{0}', space=sflag, size = 0x4, scoped, tag = 'scoped memory for tpu_custom_call.1']
    #allocation7 [shape = 'u8[512]{0}', space=vmem, size = 0x400, scoped, tag = 'input window, operand 12, single buffered']
    #allocation8 [shape = 'u8[8192]{0}', space=vmem, size = 0x2000, scoped, tag = 'output window, operand 0']
    %22 = vsyncpa [#allocation3], 0
    %23 = vsyncpa [#allocation6], 0
    %24 = vsyncpa [#allocation4], 0
    %s25 = scalar_lea.sflag [#allocation4], 1
    %26 = vsyncpa %s25, 0
    loop: start=0, step=1, limit=4
    $region2: #{tpu_custom_call.1} parent=1 // loop_pre_header
      _
    $region3: #{tpu_custom_call.1} parent=1 // loop_header
      %s28 = sphi 0, %s32
      %p29 = scmp.ge.s32.totalorder %s28, 4
      %s38 = sphi 0, %s40
      %s41 = sphi 0, %s38
      %s42 = sphi 0, %s41
      %s58 = sphi 0, %s42
      %s64 = sphi 0, %s66
      %s67 = sphi 0, %s64
      %s68 = sphi 0, %s67
      %s84 = sphi 0, %s68
      %s90 = sphi 0, %s92
      %s93 = sphi 0, %s90
      %s94 = sphi 0, %s93
      %s110 = sphi 0, %s94
      %s114 = sphi 0, %s114
      %s116 = sphi 0, %s114
      %s117 = sphi 0, %s116
      %s131 = sphi 0, %s117
      %s135 = sphi 0, %s135
      %s137 = sphi 0, %s135
      %s138 = sphi 0, %s137
      %s152 = sphi 0, %s138
      %s156 = sphi 0, %s156
      %s158 = sphi 0, %s156
      %s159 = sphi 0, %s158
      %s173 = sphi 0, %s159
      %s177 = sphi 0, %s177
      %s179 = sphi 0, %s177
      %s180 = sphi 0, %s179
      %s194 = sphi 0, %s180
      %s198 = sphi 0, %s198
      %s200 = sphi 0, %s198
      %s201 = sphi 0, %s200
      %s215 = sphi 0, %s201
      %s219 = sphi 0, %s219
      %s221 = sphi 0, %s219
      %s222 = sphi 0, %s221
      %s236 = sphi 0, %s222
      %s240 = sphi 0, %s240
      %s242 = sphi 0, %s240
      %s243 = sphi 0, %s242
      %s257 = sphi 0, %s243
      %s261 = sphi 0, %s261
      %s263 = sphi 0, %s261
      %s264 = sphi 0, %s263
      %s278 = sphi 0, %s264
      %s282 = sphi 0, %s282
      %s284 = sphi 0, %s282
      %s285 = sphi 0, %s284
      %s299 = sphi 0, %s285
      %s303 = sphi 0, %s303
      %s305 = sphi 0, %s303
      %s306 = sphi 0, %s305
      %s320 = sphi 0, %s306
      %s324 = sphi 0, %s324
      %s326 = sphi 0, %s324
      %s327 = sphi 0, %s326
      %s341 = sphi 0, %s327
      %s345 = sphi 0, %s345
      %s347 = sphi 0, %s345
      %s348 = sphi 0, %s347
      %s362 = sphi 0, %s348
      %s366 = sphi 0, %s366
      %s368 = sphi 0, %s366
      %s369 = sphi 0, %s368
      %s383 = sphi 0, %s369
      %s387 = sphi 0, %s387
      %s389 = sphi 0, %s387
      %s390 = sphi 0, %s389
      %s404 = sphi 0, %s390
      %s410 = sphi 0, %s412
      %s413 = sphi 0, %s410
      %s414 = sphi 0, %s413
      %s430 = sphi 0, %s414
    $region4: #{tpu_custom_call.1} parent=1 // loop_header_branch
      %31 = sbr.rel (%p29) target = $region8
    $region5: #{tpu_custom_call.1} parent=1 // loop_body
      %s33 = ssub.s32 %s28, 1
      %s34 = ssub.s32 %s28, 2
      %s35 = sadd.s32 %s28, 1
      %s36 = ssub.s32 %s28, %s35
      %p37 = scmp.eq.s32.totalorder %s36, 0
      %s39 = sadd.s32 %s38, 1
      %s40 = scalar_select %p37, %s38, %s39
      %p43 = pneg %p37
      %p44 = scmp.eq.s32.totalorder %s28, 1
      %p45 = por %p43, %p44
      %p46 = scmp.ne.s32.totalorder %s38, %s41
      %p47 = scmp.eq.s32.totalorder %s28, 0
      %p48 = por %p46, %p47
      %p49 = scmp.ne.s32.totalorder %s38, %s41
      %p50 = scmp.eq.s32.totalorder %s33, 1
      %p51 = por %p49, %p50
      %p52 = scmp.ne.s32.totalorder %s41, %s42
      %p53 = scmp.eq.s32.totalorder %s33, 0
      %p54 = por %p52, %p53
      %p55 = scmp.ne.s32.totalorder %s41, %s42
      %p56 = scmp.eq.s32.totalorder %s34, 1
      %p57 = por %p55, %p56
      %p59 = scmp.ne.s32.totalorder %s42, %s58
      %p60 = scmp.eq.s32.totalorder %s34, 0
      %p61 = por %p59, %p60
      %s62 = ssub.s32 %s28, %s35
      %p63 = scmp.eq.s32.totalorder %s62, 0
      %s65 = sadd.s32 %s64, 1
      %s66 = scalar_select %p63, %s64, %s65
      %p69 = pneg %p63
      %p70 = scmp.eq.s32.totalorder %s28, 1
      %p71 = por %p69, %p70
      %p72 = scmp.ne.s32.totalorder %s64, %s67
      %p73 = scmp.eq.s32.totalorder %s28, 0
      %p74 = por %p72, %p73
      %p75 = scmp.ne.s32.totalorder %s64, %s67
      %p76 = scmp.eq.s32.totalorder %s33, 1
      %p77 = por %p75, %p76
      %p78 = scmp.ne.s32.totalorder %s67, %s68
      %p79 = scmp.eq.s32.totalorder %s33, 0
      %p80 = por %p78, %p79
      %p81 = scmp.ne.s32.totalorder %s67, %s68
      %p82 = scmp.eq.s32.totalorder %s34, 1
      %p83 = por %p81, %p82
      %p85 = scmp.ne.s32.totalorder %s68, %s84
      %p86 = scmp.eq.s32.totalorder %s34, 0
      %p87 = por %p85, %p86
      %s88 = ssub.s32 %s28, %s35
      %p89 = scmp.eq.s32.totalorder %s88, 0
      %s91 = sadd.s32 %s90, 1
      %s92 = scalar_select %p89, %s90, %s91
      %p95 = pneg %p89
      %p96 = scmp.eq.s32.totalorder %s28, 1
      %p97 = por %p95, %p96
      %p98 = scmp.ne.s32.totalorder %s90, %s93
      %p99 = scmp.eq.s32.totalorder %s28, 0
      %p100 = por %p98, %p99
      %p101 = scmp.ne.s32.totalorder %s90, %s93
      %p102 = scmp.eq.s32.totalorder %s33, 1
      %p103 = por %p101, %p102
      %p104 = scmp.ne.s32.totalorder %s93, %s94
      %p105 = scmp.eq.s32.totalorder %s33, 0
      %p106 = por %p104, %p105
      %p107 = scmp.ne.s32.totalorder %s93, %s94
      %p108 = scmp.eq.s32.totalorder %s34, 1
      %p109 = por %p107, %p108
      %p111 = scmp.ne.s32.totalorder %s94, %s110
      %p112 = scmp.eq.s32.totalorder %s34, 0
      %p113 = por %p111, %p112
      %s115 = sadd.s32 %s114, 1
      %p118 = scmp.eq.s32.totalorder %s28, 1
      %p119 = scmp.ne.s32.totalorder %s114, %s116
      %p120 = scmp.eq.s32.totalorder %s28, 0
      %p121 = por %p119, %p120
      %p122 = scmp.ne.s32.totalorder %s114, %s116
      %p123 = scmp.eq.s32.totalorder %s33, 1
      %p124 = por %p122, %p123
      %p125 = scmp.ne.s32.totalorder %s116, %s117
      %p126 = scmp.eq.s32.totalorder %s33, 0
      %p127 = por %p125, %p126
      %p128 = scmp.ne.s32.totalorder %s116, %s117
      %p129 = scmp.eq.s32.totalorder %s34, 1
      %p130 = por %p128, %p129
      %p132 = scmp.ne.s32.totalorder %s117, %s131
      %p133 = scmp.eq.s32.totalorder %s34, 0
      %p134 = por %p132, %p133
      %s136 = sadd.s32 %s135, 1
      %p139 = scmp.eq.s32.totalorder %s28, 1
      %p140 = scmp.ne.s32.totalorder %s135, %s137
      %p141 = scmp.eq.s32.totalorder %s28, 0
      %p142 = por %p140, %p141
      %p143 = scmp.ne.s32.totalorder %s135, %s137
      %p144 = scmp.eq.s32.totalorder %s33, 1
      %p145 = por %p143, %p144
      %p146 = scmp.ne.s32.totalorder %s137, %s138
      %p147 = scmp.eq.s32.totalorder %s33, 0
      %p148 = por %p146, %p147
      %p149 = scmp.ne.s32.totalorder %s137, %s138
      %p150 = scmp.eq.s32.totalorder %s34, 1
      %p151 = por %p149, %p150
      %p153 = scmp.ne.s32.totalorder %s138, %s152
      %p154 = scmp.eq.s32.totalorder %s34, 0
      %p155 = por %p153, %p154
      %s157 = sadd.s32 %s156, 1
      %p160 = scmp.eq.s32.totalorder %s28, 1
      %p161 = scmp.ne.s32.totalorder %s156, %s158
      %p162 = scmp.eq.s32.totalorder %s28, 0
      %p163 = por %p161, %p162
      %p164 = scmp.ne.s32.totalorder %s156, %s158
      %p165 = scmp.eq.s32.totalorder %s33, 1
      %p166 = por %p164, %p165
      %p167 = scmp.ne.s32.totalorder %s158, %s159
      %p168 = scmp.eq.s32.totalorder %s33, 0
      %p169 = por %p167, %p168
      %p170 = scmp.ne.s32.totalorder %s158, %s159
      %p171 = scmp.eq.s32.totalorder %s34, 1
      %p172 = por %p170, %p171
      %p174 = scmp.ne.s32.totalorder %s159, %s173
      %p175 = scmp.eq.s32.totalorder %s34, 0
      %p176 = por %p174, %p175
      %s178 = sadd.s32 %s177, 1
      %p181 = scmp.eq.s32.totalorder %s28, 1
      %p182 = scmp.ne.s32.totalorder %s177, %s179
      %p183 = scmp.eq.s32.totalorder %s28, 0
      %p184 = por %p182, %p183
      %p185 = scmp.ne.s32.totalorder %s177, %s179
      %p186 = scmp.eq.s32.totalorder %s33, 1
      %p187 = por %p185, %p186
      %p188 = scmp.ne.s32.totalorder %s179, %s180
      %p189 = scmp.eq.s32.totalorder %s33, 0
      %p190 = por %p188, %p189
      %p191 = scmp.ne.s32.totalorder %s179, %s180
      %p192 = scmp.eq.s32.totalorder %s34, 1
      %p193 = por %p191, %p192
      %p195 = scmp.ne.s32.totalorder %s180, %s194
      %p196 = scmp.eq.s32.totalorder %s34, 0
      %p197 = por %p195, %p196
      %s199 = sadd.s32 %s198, 1
      %p202 = scmp.eq.s32.totalorder %s28, 1
      %p203 = scmp.ne.s32.totalorder %s198, %s200
      %p204 = scmp.eq.s32.totalorder %s28, 0
      %p205 = por %p203, %p204
      %p206 = scmp.ne.s32.totalorder %s198, %s200
      %p207 = scmp.eq.s32.totalorder %s33, 1
      %p208 = por %p206, %p207
      %p209 = scmp.ne.s32.totalorder %s200, %s201
      %p210 = scmp.eq.s32.totalorder %s33, 0
      %p211 = por %p209, %p210
      %p212 = scmp.ne.s32.totalorder %s200, %s201
      %p213 = scmp.eq.s32.totalorder %s34, 1
      %p214 = por %p212, %p213
      %p216 = scmp.ne.s32.totalorder %s201, %s215
      %p217 = scmp.eq.s32.totalorder %s34, 0
      %p218 = por %p216, %p217
      %s220 = sadd.s32 %s219, 1
      %p223 = scmp.eq.s32.totalorder %s28, 1
      %p224 = scmp.ne.s32.totalorder %s219, %s221
      %p225 = scmp.eq.s32.totalorder %s28, 0
      %p226 = por %p224, %p225
      %p227 = scmp.ne.s32.totalorder %s219, %s221
      %p228 = scmp.eq.s32.totalorder %s33, 1
      %p229 = por %p227, %p228
      %p230 = scmp.ne.s32.totalorder %s221, %s222
      %p231 = scmp.eq.s32.totalorder %s33, 0
      %p232 = por %p230, %p231
      %p233 = scmp.ne.s32.totalorder %s221, %s222
      %p234 = scmp.eq.s32.totalorder %s34, 1
      %p235 = por %p233, %p234
      %p237 = scmp.ne.s32.totalorder %s222, %s236
      %p238 = scmp.eq.s32.totalorder %s34, 0
      %p239 = por %p237, %p238
      %s241 = sadd.s32 %s240, 1
      %p244 = scmp.eq.s32.totalorder %s28, 1
      %p245 = scmp.ne.s32.totalorder %s240, %s242
      %p246 = scmp.eq.s32.totalorder %s28, 0
      %p247 = por %p245, %p246
      %p248 = scmp.ne.s32.totalorder %s240, %s242
      %p249 = scmp.eq.s32.totalorder %s33, 1
      %p250 = por %p248, %p249
      %p251 = scmp.ne.s32.totalorder %s242, %s243
      %p252 = scmp.eq.s32.totalorder %s33, 0
      %p253 = por %p251, %p252
      %p254 = scmp.ne.s32.totalorder %s242, %s243
      %p255 = scmp.eq.s32.totalorder %s34, 1
      %p256 = por %p254, %p255
      %p258 = scmp.ne.s32.totalorder %s243, %s257
      %p259 = scmp.eq.s32.totalorder %s34, 0
      %p260 = por %p258, %p259
      %s262 = sadd.s32 %s261, 1
      %p265 = scmp.eq.s32.totalorder %s28, 1
      %p266 = scmp.ne.s32.totalorder %s261, %s263
      %p267 = scmp.eq.s32.totalorder %s28, 0
      %p268 = por %p266, %p267
      %p269 = scmp.ne.s32.totalorder %s261, %s263
      %p270 = scmp.eq.s32.totalorder %s33, 1
      %p271 = por %p269, %p270
      %p272 = scmp.ne.s32.totalorder %s263, %s264
      %p273 = scmp.eq.s32.totalorder %s33, 0
      %p274 = por %p272, %p273
      %p275 = scmp.ne.s32.totalorder %s263, %s264
      %p276 = scmp.eq.s32.totalorder %s34, 1
      %p277 = por %p275, %p276
      %p279 = scmp.ne.s32.totalorder %s264, %s278
      %p280 = scmp.eq.s32.totalorder %s34, 0
      %p281 = por %p279, %p280
      %s283 = sadd.s32 %s282, 1
      %p286 = scmp.eq.s32.totalorder %s28, 1
      %p287 = scmp.ne.s32.totalorder %s282, %s284
      %p288 = scmp.eq.s32.totalorder %s28, 0
      %p289 = por %p287, %p288
      %p290 = scmp.ne.s32.totalorder %s282, %s284
      %p291 = scmp.eq.s32.totalorder %s33, 1
      %p292 = por %p290, %p291
      %p293 = scmp.ne.s32.totalorder %s284, %s285
      %p294 = scmp.eq.s32.totalorder %s33, 0
      %p295 = por %p293, %p294
      %p296 = scmp.ne.s32.totalorder %s284, %s285
      %p297 = scmp.eq.s32.totalorder %s34, 1
      %p298 = por %p296, %p297
      %p300 = scmp.ne.s32.totalorder %s285, %s299
      %p301 = scmp.eq.s32.totalorder %s34, 0
      %p302 = por %p300, %p301
      %s304 = sadd.s32 %s303, 1
      %p307 = scmp.eq.s32.totalorder %s28, 1
      %p308 = scmp.ne.s32.totalorder %s303, %s305
      %p309 = scmp.eq.s32.totalorder %s28, 0
      %p310 = por %p308, %p309
      %p311 = scmp.ne.s32.totalorder %s303, %s305
      %p312 = scmp.eq.s32.totalorder %s33, 1
      %p313 = por %p311, %p312
      %p314 = scmp.ne.s32.totalorder %s305, %s306
      %p315 = scmp.eq.s32.totalorder %s33, 0
      %p316 = por %p314, %p315
      %p317 = scmp.ne.s32.totalorder %s305, %s306
      %p318 = scmp.eq.s32.totalorder %s34, 1
      %p319 = por %p317, %p318
      %p321 = scmp.ne.s32.totalorder %s306, %s320
      %p322 = scmp.eq.s32.totalorder %s34, 0
      %p323 = por %p321, %p322
      %s325 = sadd.s32 %s324, 1
      %p328 = scmp.eq.s32.totalorder %s28, 1
      %p329 = scmp.ne.s32.totalorder %s324, %s326
      %p330 = scmp.eq.s32.totalorder %s28, 0
      %p331 = por %p329, %p330
      %p332 = scmp.ne.s32.totalorder %s324, %s326
      %p333 = scmp.eq.s32.totalorder %s33, 1
      %p334 = por %p332, %p333
      %p335 = scmp.ne.s32.totalorder %s326, %s327
      %p336 = scmp.eq.s32.totalorder %s33, 0
      %p337 = por %p335, %p336
      %p338 = scmp.ne.s32.totalorder %s326, %s327
      %p339 = scmp.eq.s32.totalorder %s34, 1
      %p340 = por %p338, %p339
      %p342 = scmp.ne.s32.totalorder %s327, %s341
      %p343 = scmp.eq.s32.totalorder %s34, 0
      %p344 = por %p342, %p343
      %s346 = sadd.s32 %s345, 1
      %p349 = scmp.eq.s32.totalorder %s28, 1
      %p350 = scmp.ne.s32.totalorder %s345, %s347
      %p351 = scmp.eq.s32.totalorder %s28, 0
      %p352 = por %p350, %p351
      %p353 = scmp.ne.s32.totalorder %s345, %s347
      %p354 = scmp.eq.s32.totalorder %s33, 1
      %p355 = por %p353, %p354
      %p356 = scmp.ne.s32.totalorder %s347, %s348
      %p357 = scmp.eq.s32.totalorder %s33, 0
      %p358 = por %p356, %p357
      %p359 = scmp.ne.s32.totalorder %s347, %s348
      %p360 = scmp.eq.s32.totalorder %s34, 1
      %p361 = por %p359, %p360
      %p363 = scmp.ne.s32.totalorder %s348, %s362
      %p364 = scmp.eq.s32.totalorder %s34, 0
      %p365 = por %p363, %p364
      %s367 = sadd.s32 %s366, 1
      %p370 = scmp.eq.s32.totalorder %s28, 1
      %p371 = scmp.ne.s32.totalorder %s366, %s368
      %p372 = scmp.eq.s32.totalorder %s28, 0
      %p373 = por %p371, %p372
      %p374 = scmp.ne.s32.totalorder %s366, %s368
      %p375 = scmp.eq.s32.totalorder %s33, 1
      %p376 = por %p374, %p375
      %p377 = scmp.ne.s32.totalorder %s368, %s369
      %p378 = scmp.eq.s32.totalorder %s33, 0
      %p379 = por %p377, %p378
      %p380 = scmp.ne.s32.totalorder %s368, %s369
      %p381 = scmp.eq.s32.totalorder %s34, 1
      %p382 = por %p380, %p381
      %p384 = scmp.ne.s32.totalorder %s369, %s383
      %p385 = scmp.eq.s32.totalorder %s34, 0
      %p386 = por %p384, %p385
      %s388 = sadd.s32 %s387, 1
      %p391 = scmp.eq.s32.totalorder %s28, 1
      %p392 = scmp.ne.s32.totalorder %s387, %s389
      %p393 = scmp.eq.s32.totalorder %s28, 0
      %p394 = por %p392, %p393
      %p395 = scmp.ne.s32.totalorder %s387, %s389
      %p396 = scmp.eq.s32.totalorder %s33, 1
      %p397 = por %p395, %p396
      %p398 = scmp.ne.s32.totalorder %s389, %s390
      %p399 = scmp.eq.s32.totalorder %s33, 0
      %p400 = por %p398, %p399
      %p401 = scmp.ne.s32.totalorder %s389, %s390
      %p402 = scmp.eq.s32.totalorder %s34, 1
      %p403 = por %p401, %p402
      %p405 = scmp.ne.s32.totalorder %s390, %s404
      %p406 = scmp.eq.s32.totalorder %s34, 0
      %p407 = por %p405, %p406
      %s408 = ssub.s32 %s28, %s35
      %p409 = scmp.eq.s32.totalorder %s408, 0
      %s411 = sadd.s32 %s410, 1
      %s412 = scalar_select %p409, %s410, %s411
      %p415 = pneg %p409
      %p416 = scmp.eq.s32.totalorder %s28, 1
      %p417 = por %p415, %p416
      %p418 = scmp.ne.s32.totalorder %s410, %s413
      %p419 = scmp.eq.s32.totalorder %s28, 0
      %p420 = por %p418, %p419
      %p421 = scmp.ne.s32.totalorder %s410, %s413
      %p422 = scmp.eq.s32.totalorder %s33, 1
      %p423 = por %p421, %p422
      %p424 = scmp.ne.s32.totalorder %s413, %s414
      %p425 = scmp.eq.s32.totalorder %s33, 0
      %p426 = por %p424, %p425
      %p427 = scmp.ne.s32.totalorder %s413, %s414
      %p428 = scmp.eq.s32.totalorder %s34, 1
      %p429 = por %p427, %p428
      %p431 = scmp.ne.s32.totalorder %s414, %s430
      %p432 = scmp.eq.s32.totalorder %s34, 0
      %p433 = por %p431, %p432
      %p434 = scmp.le.s32.totalorder 1, %s28
      %p435 = scmp.lt.s32.totalorder %s28, 3
      %p436 = pnand %p434, %p435
      %p437 = pneg %p436
      // Predicated region
      $region9: #{tpu_custom_call.1} parent=5 // pred_check
        _
      $region10: #{tpu_custom_call.1} parent=5 // pred_check_branch
        %439 = sbr.rel (%p436) target = $region12
      $region11: #{tpu_custom_call.1} parent=5 // pred_region
        %s440 = ssub.s32 %s28, 1
        // Predicated region
        $region13: #{tpu_custom_call.1} parent=11 // pred_check
          %p441 = pneg %p127
        $region14: #{tpu_custom_call.1} parent=11 // pred_check_branch
          %443 = sbr.rel (%p441) target = $region16
        $region15: #{tpu_custom_call.1} parent=11 // pred_region
          _
        $region16: #{tpu_custom_call.1} parent=11 // pred_fallthru
          _
        // Predicated region
        $region17: #{tpu_custom_call.1} parent=11 // pred_check
          %p444 = pneg %p148
        $region18: #{tpu_custom_call.1} parent=11 // pred_check_branch
          %446 = sbr.rel (%p444) target = $region20
        $region19: #{tpu_custom_call.1} parent=11 // pred_region
          _
        $region20: #{tpu_custom_call.1} parent=11 // pred_fallthru
          _
        // Predicated region
        $region21: #{tpu_custom_call.1} parent=11 // pred_check
          %p447 = pneg %p169
        $region22: #{tpu_custom_call.1} parent=11 // pred_check_branch
          %449 = sbr.rel (%p447) target = $region24
        $region23: #{tpu_custom_call.1} parent=11 // pred_region
          _
        $region24: #{tpu_custom_call.1} parent=11 // pred_fallthru
          _
        // Predicated region
        $region25: #{tpu_custom_call.1} parent=11 // pred_check
          %p450 = pneg %p190
        $region26: #{tpu_custom_call.1} parent=11 // pred_check_branch
          %452 = sbr.rel (%p450) target = $region28
        $region27: #{tpu_custom_call.1} parent=11 // pred_region
          _
        $region28: #{tpu_custom_call.1} parent=11 // pred_fallthru
          _
        // Predicated region
        $region29: #{tpu_custom_call.1} parent=11 // pred_check
          %p453 = pneg %p211
        $region30: #{tpu_custom_call.1} parent=11 // pred_check_branch
          %455 = sbr.rel (%p453) target = $region32
        $region31: #{tpu_custom_call.1} parent=11 // pred_region
          %457 = vsyncadd [#allocation3], 0
          %s458 = sshll.u32 %s7, 4
          %s459 = int_to_ptr.hbm [resolvable:$true] %s458
          %s460 = sshll.u32 [#allocation2], 4
          %s461 = int_to_ptr.vmem [resolvable:$true] %s460
          %466 = dma.hbm_to_vmem [thread:$0]  %s459, 256, %s461, [#allocation3], 64, 64, 4
        $region32: #{tpu_custom_call.1} parent=11 // pred_fallthru
          _
        // Predicated region
        $region33: #{tpu_custom_call.1} parent=11 // pred_check
          %p467 = pneg %p232
        $region34: #{tpu_custom_call.1} parent=11 // pred_check_branch
          %469 = sbr.rel (%p467) target = $region36
        $region35: #{tpu_custom_call.1} parent=11 // pred_region
          _
        $region36: #{tpu_custom_call.1} parent=11 // pred_fallthru
          _
        // Predicated region
        $region37: #{tpu_custom_call.1} parent=11 // pred_check
          %p470 = pneg %p253
        $region38: #{tpu_custom_call.1} parent=11 // pred_check_branch
          %472 = sbr.rel (%p470) target = $region40
        $region39: #{tpu_custom_call.1} parent=11 // pred_region
          _
        $region40: #{tpu_custom_call.1} parent=11 // pred_fallthru
          _
        // Predicated region
        $region41: #{tpu_custom_call.1} parent=11 // pred_check
          %p473 = pneg %p274
        $region42: #{tpu_custom_call.1} parent=11 // pred_check_branch
          %475 = sbr.rel (%p473) target = $region44
        $region43: #{tpu_custom_call.1} parent=11 // pred_region
          _
        $region44: #{tpu_custom_call.1} parent=11 // pred_fallthru
          _
        // Predicated region
        $region45: #{tpu_custom_call.1} parent=11 // pred_check
          %p476 = pneg %p295
        $region46: #{tpu_custom_call.1} parent=11 // pred_check_branch
          %478 = sbr.rel (%p476) target = $region48
        $region47: #{tpu_custom_call.1} parent=11 // pred_region
          %480 = vsyncadd [#allocation6], 0
          %s481 = sshll.u32 %s11, 4
          %s482 = int_to_ptr.hbm [resolvable:$true] %s481
          %s483 = sshll.u32 [#allocation5], 4
          %s484 = int_to_ptr.vmem [resolvable:$true] %s483
          %489 = dma.hbm_to_vmem [thread:$0]  %s482, 256, %s484, [#allocation6], 64, 64, 4
        $region48: #{tpu_custom_call.1} parent=11 // pred_fallthru
          _
        // Predicated region
        $region49: #{tpu_custom_call.1} parent=11 // pred_check
          %p490 = pneg %p316
        $region50: #{tpu_custom_call.1} parent=11 // pred_check_branch
          %492 = sbr.rel (%p490) target = $region52
        $region51: #{tpu_custom_call.1} parent=11 // pred_region
          %494 = vsyncadd [#allocation6], 0
          %s496 = sshll.u32 %s12, 4
          %s497 = int_to_ptr.hbm [resolvable:$true] %s496
          %s498 = sshll.u32 [#allocation7], 4
          %s499 = int_to_ptr.vmem [resolvable:$true] %s498
          %501 = dma.hbm_to_vmem [thread:$0]  %s497, 16, %s499, [#allocation6]
        $region52: #{tpu_custom_call.1} parent=11 // pred_fallthru
          _
        // Predicated region
        $region53: #{tpu_custom_call.1} parent=11 // pred_check
          %p502 = pneg %p337
        $region54: #{tpu_custom_call.1} parent=11 // pred_check_branch
          %504 = sbr.rel (%p502) target = $region56
        $region55: #{tpu_custom_call.1} parent=11 // pred_region
          _
        $region56: #{tpu_custom_call.1} parent=11 // pred_fallthru
          _
        // Predicated region
        $region57: #{tpu_custom_call.1} parent=11 // pred_check
          %p505 = pneg %p358
        $region58: #{tpu_custom_call.1} parent=11 // pred_check_branch
          %507 = sbr.rel (%p505) target = $region60
        $region59: #{tpu_custom_call.1} parent=11 // pred_region
          _
        $region60: #{tpu_custom_call.1} parent=11 // pred_fallthru
          _
        // Predicated region
        $region61: #{tpu_custom_call.1} parent=11 // pred_check
          %p508 = pneg %p379
        $region62: #{tpu_custom_call.1} parent=11 // pred_check_branch
          %510 = sbr.rel (%p508) target = $region64
        $region63: #{tpu_custom_call.1} parent=11 // pred_region
          _
        $region64: #{tpu_custom_call.1} parent=11 // pred_fallthru
          _
        // Predicated region
        $region65: #{tpu_custom_call.1} parent=11 // pred_check
          %p511 = pneg %p400
        $region66: #{tpu_custom_call.1} parent=11 // pred_check_branch
          %513 = sbr.rel (%p511) target = $region68
        $region67: #{tpu_custom_call.1} parent=11 // pred_region
          _
        $region68: #{tpu_custom_call.1} parent=11 // pred_fallthru
          _
      $region12: #{tpu_custom_call.1} parent=5 // pred_fallthru
        _
      %p514 = scmp.lt.s32.totalorder %s28, 2
      // Predicated region
      $region69: #{tpu_custom_call.1} parent=5 // pred_check
        %p515 = pneg %p514
      $region70: #{tpu_custom_call.1} parent=5 // pred_check_branch
        %517 = sbr.rel (%p515) target = $region72
      $region71: #{tpu_custom_call.1} parent=5 // pred_region
        // Predicated region
        $region73: #{tpu_custom_call.1} parent=71 // pred_check
          %p518 = pneg %p48
        $region74: #{tpu_custom_call.1} parent=71 // pred_check_branch
          %520 = sbr.rel (%p518) target = $region76
        $region75: #{tpu_custom_call.1} parent=71 // pred_region
          %p521 = scmp.lt.s32.totalorder %s28, 1
          %s522 = scalar_select %p521, %s28, 1
          %s523 = smul.addr %s522, 8
          %s524 = scalar_lea.vmem %s0, %s523
        $region76: #{tpu_custom_call.1} parent=71 // pred_fallthru
          _
        // Predicated region
        $region77: #{tpu_custom_call.1} parent=71 // pred_check
          %p525 = pneg %p74
        $region78: #{tpu_custom_call.1} parent=71 // pred_check_branch
          %527 = sbr.rel (%p525) target = $region80
        $region79: #{tpu_custom_call.1} parent=71 // pred_region
          %p528 = scmp.lt.s32.totalorder %s28, 1
          %s529 = scalar_select %p528, %s28, 1
          %s530 = smul.addr %s529, 8
          %s531 = scalar_lea.vmem %s1, %s530
        $region80: #{tpu_custom_call.1} parent=71 // pred_fallthru
          _
        // Predicated region
        $region81: #{tpu_custom_call.1} parent=71 // pred_check
          %p532 = pneg %p100
        $region82: #{tpu_custom_call.1} parent=71 // pred_check_branch
          %534 = sbr.rel (%p532) target = $region84
        $region83: #{tpu_custom_call.1} parent=71 // pred_region
          %p535 = scmp.lt.s32.totalorder %s28, 1
          %s536 = scalar_select %p535, %s28, 1
          %s537 = scalar_lea.vmem %s2, %s536
        $region84: #{tpu_custom_call.1} parent=71 // pred_fallthru
          _
      $region72: #{tpu_custom_call.1} parent=5 // pred_fallthru
        _
      %p538 = scmp.le.s32.totalorder 1, %s28
      %p539 = scmp.lt.s32.totalorder %s28, 3
      %p540 = pnand %p538, %p539
      %p541 = pneg %p540
      // Predicated region
      $region85: #{tpu_custom_call.1} parent=5 // pred_check
        _
      $region86: #{tpu_custom_call.1} parent=5 // pred_check_branch
        %543 = sbr.rel (%p540) target = $region88
      $region87: #{tpu_custom_call.1} parent=5 // pred_region
        %s544 = ssub.s32 %s28, 1
        // Predicated region
        $region89: #{tpu_custom_call.1} parent=87 // pred_check
          %p545 = pneg %p211
        $region90: #{tpu_custom_call.1} parent=87 // pred_check_branch
          %547 = sbr.rel (%p545) target = $region92
        $region91: #{tpu_custom_call.1} parent=87 // pred_region
          %549 = dma.done [#allocation3], 256
        $region92: #{tpu_custom_call.1} parent=87 // pred_fallthru
          _
        // Predicated region
        $region93: #{tpu_custom_call.1} parent=87 // pred_check
          %p550 = pneg %p295
        $region94: #{tpu_custom_call.1} parent=87 // pred_check_branch
          %552 = sbr.rel (%p550) target = $region96
        $region95: #{tpu_custom_call.1} parent=87 // pred_region
          %554 = dma.done [#allocation6], 256
        $region96: #{tpu_custom_call.1} parent=87 // pred_fallthru
          _
        // Predicated region
        $region97: #{tpu_custom_call.1} parent=87 // pred_check
          %p555 = pneg %p316
        $region98: #{tpu_custom_call.1} parent=87 // pred_check_branch
          %557 = sbr.rel (%p555) target = $region100
        $region99: #{tpu_custom_call.1} parent=87 // pred_region
          %559 = dma.done [#allocation6], 16
        $region100: #{tpu_custom_call.1} parent=87 // pred_fallthru
          _
        %p560 = scmp.lt.s32.totalorder %s33, 1
        %s561 = scalar_select %p560, %s33, 1
        %s562 = smul.addr %s561, 8
        %s563 = scalar_lea.vmem %s0, %s562
        %p564 = pneg %p54
        %p565 = pneg %p51
        %p566 = scmp.lt.s32.totalorder %s33, 1
        %s567 = scalar_select %p566, %s33, 1
        %s568 = smul.addr %s567, 8
        %s569 = scalar_lea.vmem %s1, %s568
        %p570 = pneg %p80
        %p571 = pneg %p77
        %p572 = scmp.lt.s32.totalorder %s33, 1
        %s573 = scalar_select %p572, %s33, 1
        %s574 = scalar_lea.vmem %s2, %s573
        %p575 = pneg %p106
        %p576 = pneg %p103
        %p577 = pneg %p127
        %p578 = pneg %p124
        %p579 = pneg %p148
        %p580 = pneg %p145
        %p581 = pneg %p169
        %p582 = pneg %p166
        %p583 = pneg %p190
        %p584 = pneg %p187
        %p585 = pneg %p211
        %p586 = pneg %p208
        %p587 = pneg %p232
        %p588 = pneg %p229
        %p589 = pneg %p253
        %p590 = pneg %p250
        %p591 = pneg %p274
        %p592 = pneg %p271
        %p593 = pneg %p295
        %p594 = pneg %p292
        %p595 = pneg %p316
        %p596 = pneg %p313
        %p597 = pneg %p337
        %p598 = pneg %p334
        %p599 = pneg %p358
        %p600 = pneg %p355
        %p601 = pneg %p379
        %p602 = pneg %p376
        %p603 = pneg %p400
        %p604 = pneg %p397
        %p605 = pneg %p426
        %p606 = pneg %p423
        %s607 = sand.u32 %s413, 1
        %s608 = scalar_lea.sflag [#allocation4], %s607
        %s609 = sand.u32 %s413, 1
        %s610 = smul.addr %s609, 8
        %s611 = scalar_lea.vmem [#allocation8], %s610
        %p612 = scmp.lt.s32.totalorder %s33, 1
        %s613 = scalar_select %p612, %s33, 1
        %s614 = smul.addr %s613, 8
        %s615 = scalar_lea.vmem %s0, %s614
        %p616 = scmp.lt.s32.totalorder %s33, 1
        %s617 = scalar_select %p616, %s33, 1
        %s618 = smul.addr %s617, 8
        %s619 = scalar_lea.vmem %s1, %s618
        %p620 = scmp.lt.s32.totalorder %s33, 1
        %s621 = scalar_select %p620, %s33, 1
        %s622 = scalar_lea.vmem %s2, %s621
        %v624 = vld [vmem:[%s615] sm:$0xff]
        %v625 = vld [vmem:[%s619] sm:$0xff]
        %v626 = vld [vmem:[%s622] sm:$0x1]
        %v627 = vpack.c.bf16 %v624, %v624
        %v628 = vld [vmem:[%s5] sm:$0xf]
        %v629 = vld [vmem:[%s5 + $0x4] sm:$0xf]
        %v630 = vld [vmem:[%s5 + $0x8] sm:$0xf]
        %v631 = vld [vmem:[%s5 + $0xc] sm:$0xf]
        %v632 = vld [vmem:[%s6] sm:$0x1]
        %v634 = vperm.slane %v632, 0
        %v640 = vunpack.c.l.b16 %v628
        %v641 = vunpack.c.l.b16 %v629
        %v642 = vunpack.c.l.b16 %v630
        %v643 = vunpack.c.l.b16 %v631
        %v644 = vpack.c.b16 %v641, %v640
        %v645 = vpack.c.b16 %v643, %v642
        %vm648 = vcmask 261120
        %v650 = vsel %vm648, %v627, 0
        %652 = vmatpush.bf16.msra.mxu0 0
        %653 = vmatpush.bf16.msra.mxu0 0
        %654 = vmatpush.bf16.msra.mxu0 0
        %655 = vmatpush.bf16.msra.mxu0 0
        %656 = vmatpush.bf16.msra.mxu0 0
        %657 = vmatpush.bf16.msra.mxu0 0
        %658 = vmatpush.bf16.msra.mxu0 %v645
        %659 = vmatpush.bf16.msra.mxu0 %v644
        %660 = vmatmul.bf16.gmra.mxu0 %v650
        %v661 = vpop.f32.mrf.mxu0
        %v662 = vadd.f32 %v634, %v661
        %v663 = vpop.f32.mrf.mxu0
        %664 = vdwg.mxu0
        %v665 = vlaneseq
        %v666 = vshrl.u32 %v665, 7
        %v667 = vlaneseq
        %v668 = vand.u32 %v667, 127
        %v669 = vsub.s32 %v668, %v666
        %671 = vset.pattern.permute.xlu0 0
        %672 = vperm.xlu0 %671, %v625
        %v673 = vpop.permute.xlu0 %672
        %v676 = vperm.slane %v626, 0
        %v678 = vmul.f32 %v673, %v676
        %vm679 = vcmp.gt.f32.partialorder %v678, 0.0
        %v680 = vld [vmem:[%s3] sm:$0xf]
        %v681 = vld [vmem:[%s3 + $0x4] sm:$0xf]
        %v682 = vld [vmem:[%s4] sm:$0xff]
        %v683 = vld [vmem:[%s4 + $0x8] sm:$0x1]
        %v684 = vpack.c.bf16 %v662, %v662
        %686 = vrot.lane.b32.xlu0 %v684, 96
        %v687 = vpop.permute.xlu0 %686
        %vm688 = vcmask 130048
        %v690 = vsel %vm688, %v684, 0
        %v693 = vsel %vm688, %v687, 0
        %695 = vmatpush.bf16.xpose.msra.mxu0 0
        %696 = vmatpush.bf16.xpose.msra.mxu0 0
        %697 = vmatpush.bf16.xpose.msra.mxu0 0
        %698 = vmatpush.bf16.xpose.msra.mxu0 0
        %699 = vmatpush.bf16.xpose.msra.mxu0 0
        %700 = vmatpush.bf16.xpose.msra.mxu0 0
        %701 = vmatpush.bf16.xpose.msra.mxu0 0
        %702 = vmatpush.bf16.xpose.msra.mxu0 %v693
        %703 = vmatmul.bf16.gmra.mxu0 %v690
        %v704 = vpop.f32.mrf.mxu0
        %v705 = vadd.f32 0.0, %v704
        %v706 = vpop.f32.mrf.mxu0
        %707 = vdwg.mxu0
        %v708 = vmul.f32 %v705, 0.25
        %v711 = vunpack.c.l.b16 %v680
        %v712 = vunpack.c.l.b16 %v681
        %v713 = vpack.c.b16 %v712, %v711
        %715 = vmatpush.bf16.msra.mxu0 0
        %716 = vmatpush.bf16.msra.mxu0 0
        %717 = vmatpush.bf16.msra.mxu0 0
        %718 = vmatpush.bf16.msra.mxu0 0
        %719 = vmatpush.bf16.msra.mxu0 0
        %720 = vmatpush.bf16.msra.mxu0 0
        %721 = vmatpush.bf16.msra.mxu0 0
        %722 = vmatpush.bf16.msra.mxu0 %v713
        %723 = vmatmul.bf16.gmra.mxu0 %v690
        %v724 = vpop.f32.mrf.mxu0
        %v725 = vadd.f32 0.0, %v724
        %v726 = vpop.f32.mrf.mxu0
        %727 = vdwg.mxu0
        %v728 = vmul.f32 %v725, 0.25
        %vm729 = vcmp.eq.s32.totalorder %v669, 4294967292
        %731 = vset.pattern.permute.xlu0 0
        %732 = vperm.xlu0 %731, %v728
        %v733 = vpop.permute.xlu0 %732
        %v735 = vsel %vm729, %v733, 0.0
        %v736 = vadd.f32 %v708, %v735
        %vm737 = vcmp.eq.s32.totalorder %v669, 4294967293
        %738 = vset.pattern.permute.xlu0 1
        %739 = vperm.xlu0 %738, %v728
        %v740 = vpop.permute.xlu0 %739
        %v742 = vsel %vm737, %v740, 0.0
        %v743 = vadd.f32 %v736, %v742
        %vm744 = vcmp.eq.s32.totalorder %v669, 4294967294
        %745 = vset.pattern.permute.xlu0 2
        %746 = vperm.xlu0 %745, %v728
        %v747 = vpop.permute.xlu0 %746
        %v749 = vsel %vm744, %v747, 0.0
        %v750 = vadd.f32 %v743, %v749
        %vm751 = vcmp.eq.s32.totalorder %v669, 4294967295
        %752 = vset.pattern.permute.xlu0 3
        %753 = vperm.xlu0 %752, %v728
        %v754 = vpop.permute.xlu0 %753
        %v756 = vsel %vm751, %v754, 0.0
        %v757 = vadd.f32 %v750, %v756
        %vm758 = vcmp.eq.s32.totalorder %v669, 0
        %759 = vset.pattern.permute.xlu0 4
        %760 = vperm.xlu0 %759, %v728
        %v761 = vpop.permute.xlu0 %760
        %v763 = vsel %vm758, %v761, 0.0
        %v764 = vadd.f32 %v757, %v763
        %vm765 = vcmp.eq.s32.totalorder %v669, 1
        %766 = vset.pattern.permute.xlu0 5
        %767 = vperm.xlu0 %766, %v728
        %v768 = vpop.permute.xlu0 %767
        %v770 = vsel %vm765, %v768, 0.0
        %v771 = vadd.f32 %v764, %v770
        %vm772 = vcmp.eq.s32.totalorder %v669, 2
        %773 = vset.pattern.permute.xlu0 6
        %774 = vperm.xlu0 %773, %v728
        %v775 = vpop.permute.xlu0 %774
        %v777 = vsel %vm772, %v775, 0.0
        %v778 = vadd.f32 %v771, %v777
        %vm779 = vcmp.eq.s32.totalorder %v669, 3
        %780 = vset.pattern.permute.xlu0 7
        %781 = vperm.xlu0 %780, %v728
        %v782 = vpop.permute.xlu0 %781
        %v784 = vsel %vm779, %v782, 0.0
        %v785 = vadd.f32 %v778, %v784
        %vm786 = vcmp.eq.s32.totalorder %v669, 4
        %787 = vset.pattern.permute.xlu0 8
        %788 = vperm.xlu0 %787, %v728
        %v789 = vpop.permute.xlu0 %788
        %v791 = vsel %vm786, %v789, 0.0
        %v792 = vadd.f32 %v785, %v791
        %v793 = vsel %vm679, %v792, -10000.0
        %vm794 = vcmask 64512
        %v795 = vsel %vm794, %v793, -inf
        %796 = vmax.xlane.f32.xlu0 %v795
        %v797 = vpop.xlane.xlu0 %796
        %v798 = vsub.f32 %v793, %v797
        %v799 = vmul.f32 %v798, 1.442695
        %v800 = vpow.pop %v799
        %v801 = vsel %vm794, %v800, 0.0
        %802 = vadd.xlane.f32.xlu0 %v801
        %v803 = vpop.xlane.xlu0 %802
        %v804 = vrcp.pop %v803
        %v805 = vmul.f32 %v800, %v804
        %v806 = vpack.c.bf16 %v805, %v805
        %v807 = vsel %vm729, %v805, 0.0
        %v808 = vsel %vm794, %v807, 0.0
        %809 = vadd.xlane.f32.xlu0 %v808
        %v810 = vpop.xlane.xlu0 %809
        %v811 = vperm.slane %v682, 0
        %v812 = vmul.f32 %v810, %v811
        %813 = vrot.lane.b32.xlu0 %v684, 64
        %v814 = vpop.permute.xlu0 %813
        %v816 = vsel %vm794, %v806, 0
        %vm818 = vcmask 1043456
        %v820 = vsel %vm818, %v814, 0
        %822 = vmatpush.bf16.msra.mxu0 0
        %823 = vmatpush.bf16.msra.mxu0 0
        %824 = vmatpush.bf16.msra.mxu0 0
        %825 = vmatpush.bf16.msra.mxu0 0
        %826 = vmatpush.bf16.msra.mxu0 0
        %827 = vmatpush.bf16.msra.mxu0 0
        %828 = vmatpush.bf16.msra.mxu0 0
        %829 = vmatpush.bf16.msra.mxu0 %v820
        %830 = vmatmul.bf16.gmra.mxu0 %v816
        %v831 = vpop.f32.mrf.mxu0
        %v832 = vadd.f32 %v812, %v831
        %v833 = vpop.f32.mrf.mxu0
        %834 = vdwg.mxu0
        %v835 = vsel %vm737, %v805, 0.0
        %v836 = vsel %vm794, %v835, 0.0
        %837 = vadd.xlane.f32.xlu0 %v836
        %v838 = vpop.xlane.xlu0 %837
        %v839 = vperm.slane %v682, 1
        %v840 = vmul.f32 %v838, %v839
        %v841 = vadd.f32 %v832, %v840
        %v842 = vsel %vm744, %v805, 0.0
        %v843 = vsel %vm794, %v842, 0.0
        %844 = vadd.xlane.f32.xlu0 %v843
        %v845 = vpop.xlane.xlu0 %844
        %v846 = vperm.slane %v682, 2
        %v847 = vmul.f32 %v845, %v846
        %v848 = vadd.f32 %v841, %v847
        %v849 = vsel %vm751, %v805, 0.0
        %v850 = vsel %vm794, %v849, 0.0
        %851 = vadd.xlane.f32.xlu0 %v850
        %v852 = vpop.xlane.xlu0 %851
        %v853 = vperm.slane %v682, 3
        %v854 = vmul.f32 %v852, %v853
        %v855 = vadd.f32 %v848, %v854
        %v856 = vsel %vm758, %v805, 0.0
        %v857 = vsel %vm794, %v856, 0.0
        %858 = vadd.xlane.f32.xlu0 %v857
        %v859 = vpop.xlane.xlu0 %858
        %v860 = vperm.slane %v682, 4
        %v861 = vmul.f32 %v859, %v860
        %v862 = vadd.f32 %v855, %v861
        %v863 = vsel %vm765, %v805, 0.0
        %v864 = vsel %vm794, %v863, 0.0
        %865 = vadd.xlane.f32.xlu0 %v864
        %v866 = vpop.xlane.xlu0 %865
        %v867 = vperm.slane %v682, 5
        %v868 = vmul.f32 %v866, %v867
        %v869 = vadd.f32 %v862, %v868
        %v870 = vsel %vm772, %v805, 0.0
        %v871 = vsel %vm794, %v870, 0.0
        %872 = vadd.xlane.f32.xlu0 %v871
        %v873 = vpop.xlane.xlu0 %872
        %v874 = vperm.slane %v682, 6
        %v875 = vmul.f32 %v873, %v874
        %v876 = vadd.f32 %v869, %v875
        %v877 = vsel %vm779, %v805, 0.0
        %v878 = vsel %vm794, %v877, 0.0
        %879 = vadd.xlane.f32.xlu0 %v878
        %v880 = vpop.xlane.xlu0 %879
        %v881 = vperm.slane %v682, 7
        %v882 = vmul.f32 %v880, %v881
        %v883 = vadd.f32 %v876, %v882
        %v884 = vsel %vm786, %v805, 0.0
        %v885 = vsel %vm794, %v884, 0.0
        %886 = vadd.xlane.f32.xlu0 %v885
        %v887 = vpop.xlane.xlu0 %886
        %v888 = vperm.slane %v683, 0
        %v889 = vmul.f32 %v887, %v888
        %v890 = vadd.f32 %v883, %v889
        %v891 = vpack.c.bf16 %v890, %v890
        %v892 = vld [vmem:[#allocation2] sm:$0xf]
        %v893 = vld [vmem:[#allocation2 + $0x4] sm:$0xf]
        %894 = vrot.lane.b32.xlu0 %v684, 112
        %v895 = vpop.permute.xlu0 %894
        %896 = vrot.lane.b32.xlu0 %v684, 80
        %v897 = vpop.permute.xlu0 %896
        %v899 = vsel %vm688, %v895, 0
        %v902 = vsel %vm688, %v897, 0
        %904 = vmatpush.bf16.xpose.msra.mxu0 0
        %905 = vmatpush.bf16.xpose.msra.mxu0 0
        %906 = vmatpush.bf16.xpose.msra.mxu0 0
        %907 = vmatpush.bf16.xpose.msra.mxu0 0
        %908 = vmatpush.bf16.xpose.msra.mxu0 0
        %909 = vmatpush.bf16.xpose.msra.mxu0 0
        %910 = vmatpush.bf16.xpose.msra.mxu0 0
        %911 = vmatpush.bf16.xpose.msra.mxu0 %v902
        %912 = vmatmul.bf16.gmra.mxu0 %v899
        %v913 = vpop.f32.mrf.mxu0
        %v914 = vadd.f32 0.0, %v913
        %v915 = vpop.f32.mrf.mxu0
        %916 = vdwg.mxu0
        %v917 = vmul.f32 %v914, 0.25
        %918 = vmatpush.bf16.msra.mxu0 0
        %919 = vmatpush.bf16.msra.mxu0 0
        %920 = vmatpush.bf16.msra.mxu0 0
        %921 = vmatpush.bf16.msra.mxu0 0
        %922 = vmatpush.bf16.msra.mxu0 0
        %923 = vmatpush.bf16.msra.mxu0 0
        %924 = vmatpush.bf16.msra.mxu0 0
        %925 = vmatpush.bf16.msra.mxu0 %v713
        %926 = vmatmul.bf16.gmra.mxu0 %v899
        %v927 = vpop.f32.mrf.mxu0
        %v928 = vadd.f32 0.0, %v927
        %v929 = vpop.f32.mrf.mxu0
        %930 = vdwg.mxu0
        %v931 = vmul.f32 %v928, 0.25
        %933 = vset.pattern.permute.xlu0 0
        %934 = vperm.xlu0 %933, %v931
        %v935 = vpop.permute.xlu0 %934
        %v937 = vsel %vm729, %v935, 0.0
        %v938 = vadd.f32 %v917, %v937
        %939 = vset.pattern.permute.xlu0 1
        %940 = vperm.xlu0 %939, %v931
        %v941 = vpop.permute.xlu0 %940
        %v943 = vsel %vm737, %v941, 0.0
        %v944 = vadd.f32 %v938, %v943
        %945 = vset.pattern.permute.xlu0 2
        %946 = vperm.xlu0 %945, %v931
        %v947 = vpop.permute.xlu0 %946
        %v949 = vsel %vm744, %v947, 0.0
        %v950 = vadd.f32 %v944, %v949
        %951 = vset.pattern.permute.xlu0 3
        %952 = vperm.xlu0 %951, %v931
        %v953 = vpop.permute.xlu0 %952
        %v955 = vsel %vm751, %v953, 0.0
        %v956 = vadd.f32 %v950, %v955
        %957 = vset.pattern.permute.xlu0 4
        %958 = vperm.xlu0 %957, %v931
        %v959 = vpop.permute.xlu0 %958
        %v961 = vsel %vm758, %v959, 0.0
        %v962 = vadd.f32 %v956, %v961
        %963 = vset.pattern.permute.xlu0 5
        %964 = vperm.xlu0 %963, %v931
        %v965 = vpop.permute.xlu0 %964
        %v967 = vsel %vm765, %v965, 0.0
        %v968 = vadd.f32 %v962, %v967
        %969 = vset.pattern.permute.xlu0 6
        %970 = vperm.xlu0 %969, %v931
        %v971 = vpop.permute.xlu0 %970
        %v973 = vsel %vm772, %v971, 0.0
        %v974 = vadd.f32 %v968, %v973
        %975 = vset.pattern.permute.xlu0 7
        %976 = vperm.xlu0 %975, %v931
        %v977 = vpop.permute.xlu0 %976
        %v979 = vsel %vm779, %v977, 0.0
        %v980 = vadd.f32 %v974, %v979
        %981 = vset.pattern.permute.xlu0 8
        %982 = vperm.xlu0 %981, %v931
        %v983 = vpop.permute.xlu0 %982
        %v985 = vsel %vm786, %v983, 0.0
        %v986 = vadd.f32 %v980, %v985
        %v987 = vsel %vm679, %v986, -10000.0
        %v988 = vsel %vm794, %v987, -inf
        %989 = vmax.xlane.f32.xlu0 %v988
        %v990 = vpop.xlane.xlu0 %989
        %v991 = vsub.f32 %v987, %v990
        %v992 = vmul.f32 %v991, 1.442695
        %v993 = vpow.pop %v992
        %v994 = vsel %vm794, %v993, 0.0
        %995 = vadd.xlane.f32.xlu0 %v994
        %v996 = vpop.xlane.xlu0 %995
        %v997 = vrcp.pop %v996
        %v998 = vmul.f32 %v993, %v997
        %v999 = vpack.c.bf16 %v998, %v998
        %v1000 = vsel %vm729, %v998, 0.0
        %v1001 = vsel %vm794, %v1000, 0.0
        %1002 = vadd.xlane.f32.xlu0 %v1001
        %v1003 = vpop.xlane.xlu0 %1002
        %v1004 = vmul.f32 %v1003, %v811
        %1005 = vrot.lane.b32.xlu0 %v684, 48
        %v1006 = vpop.permute.xlu0 %1005
        %v1008 = vsel %vm794, %v999, 0
        %v1011 = vsel %vm818, %v1006, 0
        %1013 = vmatpush.bf16.msra.mxu0 0
        %1014 = vmatpush.bf16.msra.mxu0 0
        %1015 = vmatpush.bf16.msra.mxu0 0
        %1016 = vmatpush.bf16.msra.mxu0 0
        %1017 = vmatpush.bf16.msra.mxu0 0
        %1018 = vmatpush.bf16.msra.mxu0 0
        %1019 = vmatpush.bf16.msra.mxu0 0
        %1020 = vmatpush.bf16.msra.mxu0 %v1011
        %1021 = vmatmul.bf16.gmra.mxu0 %v1008
        %v1022 = vpop.f32.mrf.mxu0
        %v1023 = vadd.f32 %v1004, %v1022
        %v1024 = vpop.f32.mrf.mxu0
        %1025 = vdwg.mxu0
        %v1026 = vsel %vm737, %v998, 0.0
        %v1027 = vsel %vm794, %v1026, 0.0
        %1028 = vadd.xlane.f32.xlu0 %v1027
        %v1029 = vpop.xlane.xlu0 %1028
        %v1030 = vmul.f32 %v1029, %v839
        %v1031 = vadd.f32 %v1023, %v1030
        %v1032 = vsel %vm744, %v998, 0.0
        %v1033 = vsel %vm794, %v1032, 0.0
        %1034 = vadd.xlane.f32.xlu0 %v1033
        %v1035 = vpop.xlane.xlu0 %1034
        %v1036 = vmul.f32 %v1035, %v846
        %v1037 = vadd.f32 %v1031, %v1036
        %v1038 = vsel %vm751, %v998, 0.0
        %v1039 = vsel %vm794, %v1038, 0.0
        %1040 = vadd.xlane.f32.xlu0 %v1039
        %v1041 = vpop.xlane.xlu0 %1040
        %v1042 = vmul.f32 %v1041, %v853
        %v1043 = vadd.f32 %v1037, %v1042
        %v1044 = vsel %vm758, %v998, 0.0
        %v1045 = vsel %vm794, %v1044, 0.0
        %1046 = vadd.xlane.f32.xlu0 %v1045
        %v1047 = vpop.xlane.xlu0 %1046
        %v1048 = vmul.f32 %v1047, %v860
        %v1049 = vadd.f32 %v1043, %v1048
        %v1050 = vsel %vm765, %v998, 0.0
        %v1051 = vsel %vm794, %v1050, 0.0
        %1052 = vadd.xlane.f32.xlu0 %v1051
        %v1053 = vpop.xlane.xlu0 %1052
        %v1054 = vmul.f32 %v1053, %v867
        %v1055 = vadd.f32 %v1049, %v1054
        %v1056 = vsel %vm772, %v998, 0.0
        %v1057 = vsel %vm794, %v1056, 0.0
        %1058 = vadd.xlane.f32.xlu0 %v1057
        %v1059 = vpop.xlane.xlu0 %1058
        %v1060 = vmul.f32 %v1059, %v874
        %v1061 = vadd.f32 %v1055, %v1060
        %v1062 = vsel %vm779, %v998, 0.0
        %v1063 = vsel %vm794, %v1062, 0.0
        %1064 = vadd.xlane.f32.xlu0 %v1063
        %v1065 = vpop.xlane.xlu0 %1064
        %v1066 = vmul.f32 %v1065, %v881
        %v1067 = vadd.f32 %v1061, %v1066
        %v1068 = vsel %vm786, %v998, 0.0
        %v1069 = vsel %vm794, %v1068, 0.0
        %1070 = vadd.xlane.f32.xlu0 %v1069
        %v1071 = vpop.xlane.xlu0 %1070
        %v1072 = vmul.f32 %v1071, %v888
        %v1073 = vadd.f32 %v1067, %v1072
        %v1074 = vpack.c.bf16 %v1073, %v1073
        %s1075 = scalar_lea.vmem [#allocation2], 8
        %v1076 = vld [vmem:[%s1075] sm:$0xf]
        %v1077 = vld [vmem:[%s1075 + $0x4] sm:$0xf]
        %v1080 = vunpack.c.l.b16 %v1076
        %v1081 = vunpack.c.l.b16 %v1077
        %v1082 = vpack.c.b16 %v1081, %v1080
        %v1085 = vsel %vm688, %v1074, 0
        %1087 = vmatpush.bf16.msra.mxu0 0
        %1088 = vmatpush.bf16.msra.mxu0 0
        %1089 = vmatpush.bf16.msra.mxu0 0
        %1090 = vmatpush.bf16.msra.mxu0 0
        %1091 = vmatpush.bf16.msra.mxu0 0
        %1092 = vmatpush.bf16.msra.mxu0 0
        %1093 = vmatpush.bf16.msra.mxu0 0
        %1094 = vmatpush.bf16.msra.mxu0 %v1082
        %1095 = vmatmul.bf16.gmra.mxu0 %v1085
        %v1096 = vpop.f32.mrf.mxu0
        %v1097 = vadd.f32 0.0, %v1096
        %v1098 = vpop.f32.mrf.mxu0
        %1099 = vdwg.mxu0
        %v1102 = vunpack.c.l.b16 %v892
        %v1103 = vunpack.c.l.b16 %v893
        %v1104 = vpack.c.b16 %v1103, %v1102
        %v1107 = vsel %vm688, %v891, 0
        %1109 = vmatpush.bf16.msra.mxu0 0
        %1110 = vmatpush.bf16.msra.mxu0 0
        %1111 = vmatpush.bf16.msra.mxu0 0
        %1112 = vmatpush.bf16.msra.mxu0 0
        %1113 = vmatpush.bf16.msra.mxu0 0
        %1114 = vmatpush.bf16.msra.mxu0 0
        %1115 = vmatpush.bf16.msra.mxu0 0
        %1116 = vmatpush.bf16.msra.mxu0 %v1104
        %1117 = vmatmul.bf16.gmra.mxu0 %v1107
        %v1118 = vpop.f32.mrf.mxu0
        %v1119 = vadd.f32 %v1097, %v1118
        %v1120 = vpop.f32.mrf.mxu0
        %1121 = vdwg.mxu0
        %v1122 = vld [vmem:[%s8] sm:$0x1]
        %v1124 = vperm.slane %v1122, 0
        %v1126 = vadd.f32 %v1119, %v1124
        %v1127 = vadd.f32 %v624, %v1126
        %v1128 = vsel %vm648, %v1127, 0.0
        %1129 = vadd.xlane.f32.xlu0 %v1128
        %v1130 = vpop.xlane.xlu0 %1129
        %v1131 = vrcp.pop 32.0
        %v1132 = vmul.f32 32.0, %v1131
        %v1133 = vsub.f32 1.0, %v1132
        %v1134 = vmul.f32 %v1131, %v1133
        %v1135 = vadd.f32 %v1131, %v1134
        %vm1136 = vweird.f32 %v1131
        %v1137 = vsel %vm1136, %v1131, %v1135
        %v1138 = vmul.f32 %v1130, %v1137
        %v1139 = vsub.f32 %v1127, %v1138
        %v1140 = vmul.f32 %v1139, %v1139
        %v1141 = vsel %vm648, %v1140, 0.0
        %1142 = vadd.xlane.f32.xlu0 %v1141
        %v1143 = vpop.xlane.xlu0 %1142
        %v1144 = vmul.f32 %v1143, %v1137
        %v1145 = vadd.f32 %v1144, 1e-05
        %v1146 = vrsqrt.pop %v1145
        %v1147 = vmul.f32 %v1146, %v1145
        %v1148 = vmul.f32 %v1147, %v1146
        %v1149 = vmul.f32 0.5, %v1148
        %v1150 = vsub.f32 1.5, %v1149
        %v1151 = vmul.f32 %v1146, %v1150
        %vm1152 = vweird.f32 %v1145
        %vm1153 = vweird.f32 %v1146
        %vm1154 = vmor %vm1152, %vm1153
        %v1155 = vsel %vm1154, %v1146, %v1151
        %v1156 = vmul.f32 %v1139, %v1155
        %v1157 = vld [vmem:[%s9] sm:$0x1]
        %v1159 = vperm.slane %v1157, 0
        %v1161 = vmul.f32 %v1156, %v1159
        %v1162 = vld [vmem:[%s10] sm:$0x1]
        %v1164 = vperm.slane %v1162, 0
        %v1166 = vadd.f32 %v1161, %v1164
        %v1167 = vmul.f32 %v1166, %v673
        %v1168 = vpack.c.bf16 %v1167, %v1167
        %v1169 = vld [vmem:[#allocation5] sm:$0xf]
        %v1170 = vld [vmem:[#allocation5 + $0x4] sm:$0xf]
        %v1171 = vld [vmem:[#allocation5 + $0x8] sm:$0xf]
        %v1172 = vld [vmem:[#allocation5 + $0xc] sm:$0xf]
        %v1173 = vld [vmem:[#allocation7] sm:$0x1]
        %v1175 = vperm.slane %v1173, 0
        %v1181 = vunpack.c.l.b16 %v1169
        %v1182 = vunpack.c.l.b16 %v1170
        %v1183 = vunpack.c.l.b16 %v1171
        %v1184 = vunpack.c.l.b16 %v1172
        %v1185 = vpack.c.b16 %v1182, %v1181
        %v1186 = vpack.c.b16 %v1184, %v1183
        %v1190 = vsel %vm648, %v1168, 0
        %1192 = vmatpush.bf16.msra.mxu0 0
        %1193 = vmatpush.bf16.msra.mxu0 0
        %1194 = vmatpush.bf16.msra.mxu0 0
        %1195 = vmatpush.bf16.msra.mxu0 0
        %1196 = vmatpush.bf16.msra.mxu0 0
        %1197 = vmatpush.bf16.msra.mxu0 0
        %1198 = vmatpush.bf16.msra.mxu0 %v1186
        %1199 = vmatpush.bf16.msra.mxu0 %v1185
        %1200 = vmatmul.bf16.gmra.mxu0 %v1190
        %v1201 = vpop.f32.mrf.mxu0
        %v1202 = vadd.f32 %v1175, %v1201
        %v1203 = vpop.f32.mrf.mxu0
        %1204 = vdwg.mxu0
        %v1205 = vmax.f32 %v1202, 0.0
        %v1206 = vmul.f32 %v1205, %v673
        %v1207 = vpack.c.bf16 %v1206, %v1206
        %v1208 = vld [vmem:[%s13] sm:$0xf]
        %v1209 = vld [vmem:[%s13 + $0x4] sm:$0xf]
        %v1210 = vld [vmem:[%s13 + $0x8] sm:$0xf]
        %v1211 = vld [vmem:[%s13 + $0xc] sm:$0xf]
        %v1212 = vld [vmem:[%s13 + $0x10] sm:$0xf]
        %v1213 = vld [vmem:[%s13 + $0x14] sm:$0xf]
        %v1214 = vld [vmem:[%s13 + $0x18] sm:$0xf]
        %v1215 = vld [vmem:[%s13 + $0x1c] sm:$0xf]
        %v1216 = vld [vmem:[%s14] sm:$0x1]
        %v1218 = vperm.slane %v1216, 0
        %v1228 = vunpack.c.l.b16 %v1208
        %v1229 = vunpack.c.l.b16 %v1209
        %v1230 = vunpack.c.l.b16 %v1210
        %v1231 = vunpack.c.l.b16 %v1211
        %v1232 = vunpack.c.l.b16 %v1212
        %v1233 = vunpack.c.l.b16 %v1213
        %v1234 = vunpack.c.l.b16 %v1214
        %v1235 = vunpack.c.l.b16 %v1215
        %v1236 = vpack.c.b16 %v1229, %v1228
        %v1237 = vpack.c.b16 %v1231, %v1230
        %v1238 = vpack.c.b16 %v1233, %v1232
        %v1239 = vpack.c.b16 %v1235, %v1234
        %vm1244 = vcmask 523264
        %v1246 = vsel %vm1244, %v1207, 0
        %1248 = vmatpush.bf16.msra.mxu0 0
        %1249 = vmatpush.bf16.msra.mxu0 0
        %1250 = vmatpush.bf16.msra.mxu0 0
        %1251 = vmatpush.bf16.msra.mxu0 0
        %1252 = vmatpush.bf16.msra.mxu0 %v1239
        %1253 = vmatpush.bf16.msra.mxu0 %v1238
        %1254 = vmatpush.bf16.msra.mxu0 %v1237
        %1255 = vmatpush.bf16.msra.mxu0 %v1236
        %1256 = vmatmul.bf16.gmra.mxu0 %v1246
        %v1257 = vpop.f32.mrf.mxu0
        %v1258 = vadd.f32 %v1218, %v1257
        %v1259 = vpop.f32.mrf.mxu0
        %1260 = vdwg.mxu0
        %v1261 = vmul.f32 %v1258, %v673
        %v1262 = vadd.f32 %v1166, %v1261
        %v1263 = vsel %vm648, %v1262, 0.0
        %1264 = vadd.xlane.f32.xlu0 %v1263
        %v1265 = vpop.xlane.xlu0 %1264
        %v1266 = vmul.f32 %v1265, %v1137
        %v1267 = vsub.f32 %v1262, %v1266
        %v1268 = vmul.f32 %v1267, %v1267
        %v1269 = vsel %vm648, %v1268, 0.0
        %1270 = vadd.xlane.f32.xlu0 %v1269
        %v1271 = vpop.xlane.xlu0 %1270
        %v1272 = vmul.f32 %v1271, %v1137
        %v1273 = vadd.f32 %v1272, 1e-05
        %v1274 = vrsqrt.pop %v1273
        %v1275 = vmul.f32 %v1274, %v1273
        %v1276 = vmul.f32 %v1275, %v1274
        %v1277 = vmul.f32 0.5, %v1276
        %v1278 = vsub.f32 1.5, %v1277
        %v1279 = vmul.f32 %v1274, %v1278
        %vm1280 = vweird.f32 %v1273
        %vm1281 = vweird.f32 %v1274
        %vm1282 = vmor %vm1280, %vm1281
        %v1283 = vsel %vm1282, %v1274, %v1279
        %v1284 = vmul.f32 %v1267, %v1283
        %v1285 = vld [vmem:[%s15] sm:$0x1]
        %v1287 = vperm.slane %v1285, 0
        %v1289 = vmul.f32 %v1284, %v1287
        %v1290 = vld [vmem:[%s16] sm:$0x1]
        %v1292 = vperm.slane %v1290, 0
        %v1294 = vadd.f32 %v1289, %v1292
        %1295 = vst.msk [vmem:[%s611] sm:$0xff] %vm648, %v1294
        %s1296 = sand.u32 %s413, 1
        %s1297 = scalar_lea.sflag [#allocation4], %s1296
        %s1298 = sand.u32 %s413, 1
        %s1299 = smul.addr %s1298, 8
        %s1300 = scalar_lea.vmem [#allocation8], %s1299
        // Predicated region
        $region101: #{tpu_custom_call.1} parent=87 // pred_check
          %p1301 = pneg %p423
        $region102: #{tpu_custom_call.1} parent=87 // pred_check_branch
          %1303 = sbr.rel (%p1301) target = $region104
        $region103: #{tpu_custom_call.1} parent=87 // pred_region
          %1305 = vsyncadd %s1297, 0
          %s1306 = smul.addr %s33, 8
          %s1307 = scalar_lea.hbm %s17, %s1306
          %s1309 = sshll.u32 %s1300, 4
          %s1310 = int_to_ptr.vmem [resolvable:$true] %s1309
          %s1311 = sshll.u32 %s1307, 4
          %s1312 = int_to_ptr.hbm [resolvable:$true] %s1311
          %1314 = dma.vmem_to_hbm [thread:$0]  %s1310, 128, %s1312, %s1297
        $region104: #{tpu_custom_call.1} parent=87 // pred_fallthru
          _
      $region88: #{tpu_custom_call.1} parent=5 // pred_fallthru
        _
      %p1315 = scmp.le.s32.totalorder 2, %s28
      // Predicated region
      $region105: #{tpu_custom_call.1} parent=5 // pred_check
        %p1316 = pneg %p1315
      $region106: #{tpu_custom_call.1} parent=5 // pred_check_branch
        %1318 = sbr.rel (%p1316) target = $region108
      $region107: #{tpu_custom_call.1} parent=5 // pred_region
        %s1319 = ssub.s32 %s28, 2
        // Predicated region
        $region109: #{tpu_custom_call.1} parent=107 // pred_check
          %p1320 = pneg %p429
        $region110: #{tpu_custom_call.1} parent=107 // pred_check_branch
          %1322 = sbr.rel (%p1320) target = $region112
        $region111: #{tpu_custom_call.1} parent=107 // pred_region
          %s1323 = sand.u32 %s414, 1
          %s1324 = scalar_lea.sflag [#allocation4], %s1323
          %s1325 = sand.u32 %s414, 1
          %s1326 = smul.addr %s1325, 8
          %s1327 = scalar_lea.vmem [#allocation8], %s1326
          %1329 = dma.done %s1324, 128
        $region112: #{tpu_custom_call.1} parent=107 // pred_fallthru
          _
      $region108: #{tpu_custom_call.1} parent=5 // pred_fallthru
        _
    $region6: #{tpu_custom_call.1} parent=1 // loop_footer
      %s32 = sadd.s32 1, %s28
    $region7: #{tpu_custom_call.1} parent=1 // loop_footer_branch
      %27 = sbr.rel target = $region3
    $region8: #{tpu_custom_call.1} parent=1 // loop_exit
      _
    %1330 = vsyncpa [#allocation3], 1
    %s1331 = scalar_lea.sflag [#allocation3], 1
    %1332 = vsyncpa %s1331, 1
    %1333 = vsyncpa [#allocation6], 1
    %1334 = vsyncpa [#allocation4], 1
    %s1335 = scalar_lea.sflag [#allocation4], 1
    %1336 = vsyncpa %s1335, 1

</llo_original>
